<compile_context>
chip_gen: v5e
topology: v5e:2x2
jax: 0.10.0
libtpu: 0.0.40
codegen_flags: <defaults>
</compile_context>

<pallas_src>
import numpy as np
import jax
import jax.numpy as jnp
from jax.experimental import pallas as pl
from jax.experimental.pallas import tpu as pltpu

LOG2 = float(np.log(2.0))
LOG_PI = float(np.log(np.pi))


def _wavelet_constants(fsample, fmin, fmax, n_freqs, seq_len, omega0=5.0, padding="same"):
    """Unoptimized reference constants (numpy), mirroring the PyTorch module."""
    assert seq_len % 2 == 0, "only even sequence lengths supported"
    # TODO(synk): odd-sequence-length pad/unpad branch of morlet_fft_convolution not implemented.
    dtime = 1.0 / fsample
    n = seq_len
    N = 2 * n                                         # length after n//2 padding on each side
    valid_padding = int(fsample / fmin * omega0)
    unpadding = valid_padding if padding == "valid" else 0
    idx0 = n // 2 + unpadding
    idx1 = n // 2 + n - unpadding
    T = idx1 - idx0

    freqs = 2.0 ** np.linspace(np.log(fmin) / LOG2, np.log(fmax) / LOG2, n_freqs)
    log_scales = (np.log(omega0 + np.sqrt(2.0 + omega0 ** 2)) - 2.0 * LOG2 - LOG_PI
                  - np.log(freqs))                    # (F,)
    scales = np.exp(log_scales)

    k = np.arange(-N // 2, N // 2)
    omegas = -2.0 * np.pi * k / (N * dtime)           # (N,) fftshift-ed ordering
    morlet = np.exp(-0.25 * LOG_PI
                    - 0.5 * (omegas[None, :] * scales[:, None] - omega0) ** 2)  # (F, N)

    amp = np.exp(0.5 * log_scales)[:, None]           # (F, 1)
    lps = (-0.25 * LOG_PI
           + 0.25 * (omega0 - np.sqrt(omega0 ** 2 + 2.0)) ** 2
           - 0.5 * (log_scales + LOG2))[:, None]      # (F, 1) log_power_scale
    return dict(N=N, T=T, idx0=idx0, idx1=idx1,
                morlet=morlet, amp=amp, lps=lps)


def _kernel_operands(fsample, fmin, fmax, n_freqs, seq_len, omega0=5.0, padding="same",
                     align=256):
    """Build the optimized host-side operands for the Pallas kernel.

    align=256 gives full 256x256 MXU weight tiles on v6e/v7x (zero padding is free
    numerically); it is also a fine (if slightly padded) choice on v5e.
    """
    c = _wavelet_constants(fsample, fmin, fmax, n_freqs, seq_len, omega0, padding)
    N, T, idx0, idx1 = c["N"], c["T"], c["idx0"], c["idx1"]
    morlet_full = c["morlet"]                         # (F, N)

    # Fold amp * exp(log_power_scale) (positive, per-frequency) into the filter so the
    # kernel only needs |conv| and a sum-normalization (no log/exp logsumexp).
    scale_f = c["amp"] * np.exp(c["lps"])             # (F, 1)
    scaled = morlet_full * scale_f                    # (F, N)

    # One-sided Morlet support: keep only the k band where any *scaled* filter is
    # non-negligible (relative threshold), rounded up to a full MXU-tile multiple.
    col_max = scaled.max(axis=0)
    active = col_max > col_max.max() * 1e-10
    kmin = int(np.argmax(active))
    kmax = int(N - 1 - np.argmax(active[::-1]))
    k_band = kmax - kmin + 1
    K = int(np.ceil(k_band / float(align))) * align
    kstart = max(0, min(kmin, N - K))
    kstop = min(N, kstart + K)
    k_valid = kstop - kstart                          # real spectrum columns (<= K)

    morlet = np.zeros((n_freqs, K), np.float32)
    morlet[:, :k_valid] = scaled[:, kstart:kstop]

    # Inverse-DFT matrix restricted to the output time slice [idx0, idx1), applied
    # directly to the *shifted* spectrum (exactly as the reference does), zero-padded
    # along time to a multiple of `align` so output stores are lane-dense and the time
    # grid axis tiles evenly.
    Tp = int(np.ceil(T / float(align))) * align
    t = np.arange(idx0, idx1)
    kk = np.arange(kstart, kstop)
    ang = 2.0 * np.pi * np.outer(kk, t) / N
    idft_re = np.zeros((K, Tp), np.float32)
    idft_im = np.zeros((K, Tp), np.float32)
    idft_re[:k_valid, :T] = np.cos(ang) / N
    idft_im[:k_valid, :T] = np.sin(ang) / N
    return dict(N=N, T=T, Tp=Tp, K=K, kstart=kstart, kstop=kstop,
                morlet=morlet, idft_re=idft_re, idft_im=idft_im)


def _vmem_limit_bytes():
    """Generation-aware VMEM request: 75% of physical, capped at 100 MiB."""
    cap = 128 * 1024 * 1024
    try:
        cap = int(pltpu.get_tpu_info().vmem_capacity_bytes)
    except Exception:  # pragma: no cover - conservative fallback off-TPU / older jax
        pass
    return int(min(cap * 3 // 4, 100 * 1024 * 1024))


def _berman_kernel(xr_ref, xi_ref, morlet_ref, cr_ref, ci_ref, cs_ref, out_ref):
    # Per grid step (one batch tile x one time tile):
    #   xr_ref, xi_ref : (Bt, C, K)  f32   Re/Im of fftshift(fft(padded x)), band-sliced
    #   morlet_ref     : (F, K)      f32   Morlet filters with amp*exp(lps) folded in
    #   cr_ref, ci_ref : (K, Tt)     bf16  Re/Im of the inverse-DFT time tile
    #   cs_ref         : (K, Tt)     bf16  cr + ci (for the Karatsuba product)
    #   out_ref        : (Bt, C*F, Tt) f32 normalized power (rows = channel-major, freq)
    Bt, C, K = xr_ref.shape
    F = morlet_ref.shape[0]
    Tt = out_ref.shape[-1]
    M = Bt * C * F

    morlet = morlet_ref[...]                                   # (F, K)
    xr = xr_ref[...].reshape(Bt * C, 1, K)                     # (Bt*C, 1, K)
    xi = xi_ref[...].reshape(Bt * C, 1, K)

    # Re/Im of (scaled Morlet) * x_hat for all (batch, channel, freq) rows, packed
    # into a single matmul LHS.  The Karatsuba sum is formed in f32 and cast once
    # (avoids a bf16 VALU add on v5e); matmuls use bf16 operands, f32 accumulation.
    ar_f = (xr * morlet[None, :, :]).reshape(M, K)
    ai_f = (xi * morlet[None, :, :]).reshape(M, K)
    ar = ar_f.astype(jnp.bfloat16)
    ai = ai_f.astype(jnp.bfloat16)
    asum = (ar_f + ai_f).astype(jnp.bfloat16)

    cr = cr_ref[...]
    ci = ci_ref[...]
    cs = cs_ref[...]

    # Karatsuba complex multiply: 3 MXU matmuls instead of 4.
    p1 = jnp.dot(ar, cr, preferred_element_type=jnp.float32)      # (M, Tt)
    p2 = jnp.dot(ai, ci, preferred_element_type=jnp.float32)
    p3 = jnp.dot(asum, cs, preferred_element_type=jnp.float32)
    conv_r = p1 - p2
    conv_i = p3 - p1 - p2

    power = jnp.sqrt(conv_r * conv_r + conv_i * conv_i)           # already amp/lps-scaled

    # Normalize the power spectrum over (channels, freqs) per (batch, time).  This is
    # independent per time column, so it is correct per time tile.
    p3d = power.reshape(Bt, C * F, Tt)
    denom = jnp.sum(p3d, axis=1, keepdims=True)                   # (Bt, 1, Tt)
    inv = pl.reciprocal(denom + 1e-12, approx=True)               # EUP slot
    out_ref[...] = (p3d * inv).astype(out_ref.dtype)


def berman_wavelet(x, *, fsample, fmin, fmax, n_freqs, omega0=5.0, padding="same"):
    """Pallas implementation of BermanWavelet.forward (output_sequence=True).

    x: (B, C, S) float32  ->  (B, C * n_freqs, T) float32 (T == S for padding='same').
    """
    B, C, S = x.shape
    F = n_freqs
    ops = _kernel_operands(fsample, fmin, fmax, F, S, omega0, padding)
    K, Tp, T = ops["K"], ops["Tp"], ops["T"]
    kstart, kstop = ops["kstart"], ops["kstop"]
    k_valid = kstop - kstart

    xp = jnp.pad(x.astype(jnp.float32), ((0, 0), (0, 0), (S // 2, S // 2)))
    # TODO(synk): FFT has no Pallas primitive; spectrum computed with jnp.fft here (glue).
    xhat = jnp.fft.fftshift(jnp.fft.fft(xp, axis=-1), axes=-1)[..., kstart:kstop]
    xr = jnp.real(xhat).astype(jnp.float32)
    xi = jnp.imag(xhat).astype(jnp.float32)
    if k_valid < K:  # zero-pad the spectrum band up to the MXU-aligned K
        pad = ((0, 0), (0, 0), (0, K - k_valid))
        xr = jnp.pad(xr, pad)
        xi = jnp.pad(xi, pad)

    # Batch tile: fill the MXU M dimension (target ~512 rows = Bt*C*F); pad the batch
    # to a multiple of Bt instead of requiring divisibility (padded rows are zero,
    # produce zero output, and are sliced off).
    target_m = 512
    Bt = max(1, min(B, target_m // max(C * F, 1)))
    n_b = -(-B // Bt)
    B_pad = n_b * Bt
    if B_pad > B:
        xr = jnp.pad(xr, ((0, B_pad - B), (0, 0), (0, 0)))
        xi = jnp.pad(xi, ((0, B_pad - B), (0, 0), (0, 0)))

    # Time tile: bounds the (K, tile_T) constant matrices and all (M, tile_T)
    # intermediates in VMEM, and gives the pipeline / second TensorCore work.
    if Tp <= 1024:
        tile_T = Tp
    else:
        tile_T = 256
        for cand in (1024, 512):
            if Tp % cand == 0:
                tile_T = cand
                break
    n_t = Tp // tile_T

    morlet = jnp.asarray(ops["morlet"])                            # (F, K) f32
    cr = jnp.asarray(ops["idft_re"]).astype(jnp.bfloat16)          # (K, Tp) bf16
    ci = jnp.asarray(ops["idft_im"]).astype(jnp.bfloat16)
    cs = jnp.asarray(ops["idft_re"] + ops["idft_im"]).astype(jnp.bfloat16)

    out = pl.pallas_call(
        _berman_kernel,
        out_shape=jax.ShapeDtypeStruct((B_pad, C * F, Tp), jnp.float32),
        grid_spec=pltpu.PrefetchScalarGridSpec(
            num_scalar_prefetch=0,
            grid=(n_b, n_t),
            in_specs=[
                pl.BlockSpec((Bt, C, K), lambda b, t: (b, 0, 0)),      # xr
                pl.BlockSpec((Bt, C, K), lambda b, t: (b, 0, 0)),      # xi
                pl.BlockSpec((F, K), lambda b, t: (0, 0)),             # scaled Morlet filters
                pl.BlockSpec((K, tile_T), lambda b, t: (0, t)),        # idft real (bf16)
                pl.BlockSpec((K, tile_T), lambda b, t: (0, t)),        # idft imag (bf16)
                pl.BlockSpec((K, tile_T), lambda b, t: (0, t)),        # idft real+imag (bf16)
            ],
            out_specs=pl.BlockSpec((Bt, C * F, tile_T), lambda b, t: (b, 0, t)),
        ),
        compiler_params=pltpu.CompilerParams(
            dimension_semantics=("parallel", "parallel"),
            vmem_limit_bytes=_vmem_limit_bytes(),
        ),
    )(xr, xi, morlet, cr, ci, cs)
    return out[:B, :, :T]


def berman_wavelet_ref(x, *, fsample, fmin, fmax, n_freqs, omega0=5.0, padding="same"):
    """Pure-JAX mirror of the PyTorch reference (for correctness checking)."""
    B, C, S = x.shape
    c = _wavelet_constants(fsample, fmin, fmax, n_freqs, S, omega0, padding)
    xp = jnp.pad(x.astype(jnp.float32), ((0, 0), (0, 0), (S // 2, S // 2)))
    xhat = jnp.fft.fftshift(jnp.fft.fft(xp, axis=-1), axes=-1)[:, :, None, :]
    morlet = jnp.asarray(c["morlet"].astype(np.float32))[None, None]
    conv = (jnp.fft.ifft(morlet * xhat, axis=-1)[..., c["idx0"]:c["idx1"]]
            * jnp.asarray(c["amp"].astype(np.float32))[None, None])
    power = jnp.abs(conv)
    logp = jnp.log(power) + jnp.asarray(c["lps"].astype(np.float32))[None, None]
    lse = jax.scipy.special.logsumexp(logp, axis=(1, 2), keepdims=True)
    out = jnp.exp(logp - lse)
    return out.reshape(B, C * n_freqs, -1)


if __name__ == "__main__":
    B, C, S = 2, 4, 64
    fsample, fmin, fmax, n_freqs = 100.0, 1.0, 50.0, 16

    key = jax.random.PRNGKey(0)
    x = jax.random.normal(key, (B, C, S), dtype=jnp.float32)

    out = jax.block_until_ready(
        berman_wavelet(x, fsample=fsample, fmin=fmin, fmax=fmax, n_freqs=n_freqs))
    ref = jax.block_until_ready(
        berman_wavelet_ref(x, fsample=fsample, fmin=fmin, fmax=fmax, n_freqs=n_freqs))

    assert out.shape == (B, C * n_freqs, S), out.shape
    # bf16 matmul operands (f32 accumulation) -> slightly looser atol than pure-f32.
    np.testing.assert_allclose(np.asarray(out), np.asarray(ref), rtol=5e-2, atol=2e-3)
    print("KERNEL_OK")
</pallas_src>

<mosaic_0001>
module attributes {stable_mosaic.version = 11 : i64} {
  func.func @_berman_kernel(%arg0: i32, %arg1: i32, %arg2: memref<2x4x256xf32, #tpu.memory_space<vmem>>, %arg3: memref<2x4x256xf32, #tpu.memory_space<vmem>>, %arg4: memref<16x256xf32, #tpu.memory_space<vmem>>, %arg5: memref<256x256xbf16, #tpu.memory_space<vmem>>, %arg6: memref<256x256xbf16, #tpu.memory_space<vmem>>, %arg7: memref<256x256xbf16, #tpu.memory_space<vmem>>, %arg8: memref<2x64x256xf32, #tpu.memory_space<vmem>>) attributes {dimension_semantics = [#tpu.dimension_semantics<parallel>, #tpu.dimension_semantics<parallel>], iteration_bounds = array<i64: 1, 1>, scalar_prefetch = 0 : i64, scratch_operands = 0 : i64, tpu.core_type = #tpu.core_type<tc>, window_params = [{transform_indices = @transform_0, window_bounds = array<i64: 2, 4, 256>}, {transform_indices = @transform_1, window_bounds = array<i64: 2, 4, 256>}, {pipeline_mode = #tpu.pipeline_mode<synchronous>, transform_indices = @transform_2, window_bounds = array<i64: 16, 256>}, {transform_indices = @transform_3, window_bounds = array<i64: 256, 256>}, {transform_indices = @transform_4, window_bounds = array<i64: 256, 256>}, {transform_indices = @transform_5, window_bounds = array<i64: 256, 256>}, {transform_indices = @transform_6, window_bounds = array<i64: 2, 64, 256>}]} {
    %c0 = arith.constant 0 : index
    %c0_0 = arith.constant 0 : index
    %0 = vector.load %arg4[%c0, %c0_0] : memref<16x256xf32, #tpu.memory_space<vmem>>, vector<16x256xf32>
    %c0_1 = arith.constant 0 : index
    %c0_2 = arith.constant 0 : index
    %c0_3 = arith.constant 0 : index
    %1 = vector.load %arg2[%c0_1, %c0_2, %c0_3] : memref<2x4x256xf32, #tpu.memory_space<vmem>>, vector<2x4x256xf32>
    %2 = vector.shape_cast %1 : vector<2x4x256xf32> to vector<8x1x256xf32>
    %c0_4 = arith.constant 0 : index
    %c0_5 = arith.constant 0 : index
    %c0_6 = arith.constant 0 : index
    %3 = vector.load %arg3[%c0_4, %c0_5, %c0_6] : memref<2x4x256xf32, #tpu.memory_space<vmem>>, vector<2x4x256xf32>
    %4 = vector.shape_cast %3 : vector<2x4x256xf32> to vector<8x1x256xf32>
    %5 = vector.shape_cast %0 : vector<16x256xf32> to vector<1x16x256xf32>
    %6 = vector.broadcast %2 : vector<8x1x256xf32> to vector<8x16x256xf32>
    %7 = vector.broadcast %5 : vector<1x16x256xf32> to vector<8x16x256xf32>
    %8 = arith.mulf %6, %7 : vector<8x16x256xf32>
    %9 = vector.shape_cast %8 : vector<8x16x256xf32> to vector<128x256xf32>
    %10 = vector.shape_cast %0 : vector<16x256xf32> to vector<1x16x256xf32>
    %11 = vector.broadcast %4 : vector<8x1x256xf32> to vector<8x16x256xf32>
    %12 = vector.broadcast %10 : vector<1x16x256xf32> to vector<8x16x256xf32>
    %13 = arith.mulf %11, %12 : vector<8x16x256xf32>
    %14 = vector.shape_cast %13 : vector<8x16x256xf32> to vector<128x256xf32>
    %15 = arith.truncf %9 : vector<128x256xf32> to vector<128x256xbf16>
    %16 = arith.truncf %14 : vector<128x256xf32> to vector<128x256xbf16>
    %17 = arith.addf %9, %14 : vector<128x256xf32>
    %18 = arith.truncf %17 : vector<128x256xf32> to vector<128x256xbf16>
    %c0_7 = arith.constant 0 : index
    %c0_8 = arith.constant 0 : index
    %19 = vector.load %arg5[%c0_7, %c0_8] : memref<256x256xbf16, #tpu.memory_space<vmem>>, vector<256x256xbf16>
    %c0_9 = arith.constant 0 : index
    %c0_10 = arith.constant 0 : index
    %20 = vector.load %arg6[%c0_9, %c0_10] : memref<256x256xbf16, #tpu.memory_space<vmem>>, vector<256x256xbf16>
    %c0_11 = arith.constant 0 : index
    %c0_12 = arith.constant 0 : index
    %21 = vector.load %arg7[%c0_11, %c0_12] : memref<256x256xbf16, #tpu.memory_space<vmem>>, vector<256x256xbf16>
    %cst = arith.constant dense<0.000000e+00> : vector<128x256xf32>
    %22 = tpu.matmul %15, %19, %cst {dimension_numbers = #tpu.dot_dimension_numbers<[1], [0], [0], [1], [0, 0, 1, 1], [], []>} : vector<128x256xbf16>, vector<256x256xbf16>, vector<128x256xf32> -> vector<128x256xf32>
    %cst_13 = arith.constant dense<0.000000e+00> : vector<128x256xf32>
    %23 = tpu.matmul %16, %20, %cst_13 {dimension_numbers = #tpu.dot_dimension_numbers<[1], [0], [0], [1], [0, 0, 1, 1], [], []>} : vector<128x256xbf16>, vector<256x256xbf16>, vector<128x256xf32> -> vector<128x256xf32>
    %cst_14 = arith.constant dense<0.000000e+00> : vector<128x256xf32>
    %24 = tpu.matmul %18, %21, %cst_14 {dimension_numbers = #tpu.dot_dimension_numbers<[1], [0], [0], [1], [0, 0, 1, 1], [], []>} : vector<128x256xbf16>, vector<256x256xbf16>, vector<128x256xf32> -> vector<128x256xf32>
    %25 = arith.subf %22, %23 : vector<128x256xf32>
    %26 = arith.subf %24, %22 : vector<128x256xf32>
    %27 = arith.subf %26, %23 : vector<128x256xf32>
    %28 = arith.mulf %25, %25 : vector<128x256xf32>
    %29 = arith.mulf %27, %27 : vector<128x256xf32>
    %30 = arith.addf %28, %29 : vector<128x256xf32>
    %31 = math.sqrt %30 : vector<128x256xf32>
    %32 = vector.shape_cast %31 : vector<128x256xf32> to vector<2x64x256xf32>
    %cst_15 = arith.constant dense<0.000000e+00> : vector<2x256xf32>
    %33 = vector.multi_reduction <add>, %32, %cst_15 [1] : vector<2x64x256xf32> to vector<2x256xf32>
    %34 = vector.shape_cast %33 : vector<2x256xf32> to vector<2x1x256xf32>
    %cst_16 = arith.constant 9.99999996E-13 : f32
    %35 = vector.broadcast %cst_16 : f32 to vector<2x1x256xf32>
    %36 = arith.addf %34, %35 : vector<2x1x256xf32>
    %37 = tpu.reciprocal %36 {approx = true} : vector<2x1x256xf32> -> vector<2x1x256xf32>
    %38 = vector.broadcast %37 : vector<2x1x256xf32> to vector<2x64x256xf32>
    %39 = arith.mulf %32, %38 : vector<2x64x256xf32>
    %c0_17 = arith.constant 0 : index
    %c0_18 = arith.constant 0 : index
    %c0_19 = arith.constant 0 : index
    %40 = vector.load %arg8[%c0_17, %c0_18, %c0_19] : memref<2x64x256xf32, #tpu.memory_space<vmem>>, vector<2x64x256xf32>
    tpu.vector_store %arg8[%c0_17, %c0_18, %c0_19], %39 {strides = array<i32>} : memref<2x64x256xf32, #tpu.memory_space<vmem>>, vector<2x64x256xf32>,
    return
  }
  func.func @transform_0(%arg0: i32, %arg1: i32) -> (i32, i32, i32) {
    %c0_i32 = arith.constant 0 : i32
    %c0_i32_0 = arith.constant 0 : i32
    %c0_i32_1 = arith.constant 0 : i32
    return %arg0, %c0_i32, %c0_i32_0 : i32, i32, i32
  }
  func.func @transform_1(%arg0: i32, %arg1: i32) -> (i32, i32, i32) {
    %c0_i32 = arith.constant 0 : i32
    %c0_i32_0 = arith.constant 0 : i32
    %c0_i32_1 = arith.constant 0 : i32
    return %arg0, %c0_i32, %c0_i32_0 : i32, i32, i32
  }
  func.func @transform_2(%arg0: i32, %arg1: i32) -> (i32, i32) {
    %c0_i32 = arith.constant 0 : i32
    %c0_i32_0 = arith.constant 0 : i32
    %c0_i32_1 = arith.constant 0 : i32
    return %c0_i32, %c0_i32_0 : i32, i32
  }
  func.func @transform_3(%arg0: i32, %arg1: i32) -> (i32, i32) {
    %c0_i32 = arith.constant 0 : i32
    %c0_i32_0 = arith.constant 0 : i32
    return %c0_i32, %arg1 : i32, i32
  }
  func.func @transform_4(%arg0: i32, %arg1: i32) -> (i32, i32) {
    %c0_i32 = arith.constant 0 : i32
    %c0_i32_0 = arith.constant 0 : i32
    return %c0_i32, %arg1 : i32, i32
  }
  func.func @transform_5(%arg0: i32, %arg1: i32) -> (i32, i32) {
    %c0_i32 = arith.constant 0 : i32
    %c0_i32_0 = arith.constant 0 : i32
    return %c0_i32, %arg1 : i32, i32
  }
  func.func @transform_6(%arg0: i32, %arg1: i32) -> (i32, i32, i32) {
    %c0_i32 = arith.constant 0 : i32
    %c0_i32_0 = arith.constant 0 : i32
    return %arg0, %c0_i32, %arg1 : i32, i32, i32
  }
}

</mosaic_0001>

<llo_original>
// kernel: tpu_custom_call.1
$region0: #{tpu_custom_call.1}
  #allocation0 [shape = 'u32[]', space=smem, size = 0x4, offset = 0x4, fixed_abs, tag = 'smem constant byte address 0x4 - core index']
  #allocation1 [shape = 'u32[72,128]{1,0:T(1,128)}', space=vmem, size = 0x9000, scoped, tag = 'internal scratch']
  %s0 = inlined_call_operand.hbm [shape: f32[2,4,256], index: 0, kind: input, shape index: {}]
  %s1 = inlined_call_operand.hbm [shape: f32[2,4,256], index: 1, kind: input, shape index: {}]
  %s2 = inlined_call_operand.hbm [shape: f32[16,256], index: 2, kind: input, shape index: {}]
  %s3 = inlined_call_operand.hbm [shape: bf16[256,256], index: 3, kind: input, shape index: {}]
  %s4 = inlined_call_operand.hbm [shape: bf16[256,256], index: 4, kind: input, shape index: {}]
  %s5 = inlined_call_operand.hbm [shape: bf16[256,256], index: 5, kind: input, shape index: {}]
  %s6 = inlined_call_operand.hbm [shape: f32[2,64,256], index: 6, kind: output, shape index: {}]
  %s7 = sld [smem:[#allocation0]]
  $region58: #{tpu_custom_call.1} parent=0
    _
  %s9 = ssub.s32 1, %s7
  %s10 = scalar_select 0, %s9, %s7
  $region1: #{tpu_custom_call.1} parent=0
    #allocation2 [shape = 'u8[8192]{0}', space=vmem, size = 0x2000, scoped, tag = 'input window, operand 0, single buffered']
    #allocation3 [shape = 's32[1]{0}', space=sflag, size = 0x4, scoped, tag = 'scoped memory for tpu_custom_call.1']
    #allocation4 [shape = 's32[1]{0}', space=sflag, size = 0x4, scoped, tag = 'scoped memory for tpu_custom_call.1']
    #allocation5 [shape = 'u8[8192]{0}', space=vmem, size = 0x2000, scoped, tag = 'input window, operand 1, single buffered']
    #allocation6 [shape = 's32[1]{0}', space=sflag, size = 0x4, scoped, tag = 'scoped memory for tpu_custom_call.1']
    #allocation7 [shape = 'u8[16384]{0}', space=vmem, size = 0x4000, scoped, tag = 'input window, operand 2, single buffered']
    #allocation8 [shape = 'u8[131072]{0}', space=vmem, size = 0x20000, scoped, tag = 'input window, operand 3, single buffered']
    #allocation9 [shape = 's32[1]{0}', space=sflag, size = 0x4, scoped, tag = 'scoped memory for tpu_custom_call.1']
    #allocation10 [shape = 'u8[131072]{0}', space=vmem, size = 0x20000, scoped, tag = 'input window, operand 4, single buffered']
    #allocation11 [shape = 'u8[131072]{0}', space=vmem, size = 0x20000, scoped, tag = 'input window, operand 5, single buffered']
    #allocation12 [shape = 's32[1]{0}', space=sflag, size = 0x4, scoped, tag = 'scoped memory for tpu_custom_call.1']
    #allocation13 [shape = 'u8[131072]{0}', space=vmem, size = 0x20000, scoped, tag = 'output window, operand 0, single buffered']
    %11 = vsyncpa [#allocation3], 0
    %12 = vsyncpa [#allocation6], 0
    %13 = vsyncpa [#allocation9], 0
    %14 = vsyncpa [#allocation12], 0
    %15 = vsyncpa [#allocation4], 0
    // Predicated region
    $region2: #{tpu_custom_call.1} parent=1 // pred_check
      _
    $region3: #{tpu_custom_call.1} parent=1 // pred_check_branch
      %17 = sbr.rel (0) target = $region5
    $region4: #{tpu_custom_call.1} parent=1 // pred_region
      %19 = vsyncadd [#allocation3], 0
      %s20 = sshll.u32 %s0, 4
      %s21 = int_to_ptr.hbm [resolvable:$true] %s20
      %s22 = sshll.u32 [#allocation2], 4
      %s23 = int_to_ptr.vmem [resolvable:$true] %s22
      %28 = dma.hbm_to_vmem [thread:$0]  %s21, 256, %s23, [#allocation3], 128, 128, 8
    $region5: #{tpu_custom_call.1} parent=1 // pred_fallthru
      _
    // Predicated region
    $region6: #{tpu_custom_call.1} parent=1 // pred_check
      _
    $region7: #{tpu_custom_call.1} parent=1 // pred_check_branch
      %30 = sbr.rel (0) target = $region9
    $region8: #{tpu_custom_call.1} parent=1 // pred_region
      %32 = vsyncadd [#allocation6], 0
      %s33 = sshll.u32 %s1, 4
      %s34 = int_to_ptr.hbm [resolvable:$true] %s33
      %s35 = sshll.u32 [#allocation5], 4
      %s36 = int_to_ptr.vmem [resolvable:$true] %s35
      %41 = dma.hbm_to_vmem [thread:$0]  %s34, 256, %s36, [#allocation6], 128, 128, 8
    $region9: #{tpu_custom_call.1} parent=1 // pred_fallthru
      _
    // Predicated region
    $region10: #{tpu_custom_call.1} parent=1 // pred_check
      _
    $region11: #{tpu_custom_call.1} parent=1 // pred_check_branch
      %43 = sbr.rel (0) target = $region13
    $region12: #{tpu_custom_call.1} parent=1 // pred_region
      %45 = vsyncadd [#allocation6], 0
      %s46 = sshll.u32 %s2, 4
      %s47 = int_to_ptr.hbm [resolvable:$true] %s46
      %s48 = sshll.u32 [#allocation7], 4
      %s49 = int_to_ptr.vmem [resolvable:$true] %s48
      %54 = dma.hbm_to_vmem [thread:$0]  %s47, 512, %s49, [#allocation6], 256, 256, 16
    $region13: #{tpu_custom_call.1} parent=1 // pred_fallthru
      _
    // Predicated region
    $region14: #{tpu_custom_call.1} parent=1 // pred_check
      _
    $region15: #{tpu_custom_call.1} parent=1 // pred_check_branch
      %56 = sbr.rel (0) target = $region17
    $region16: #{tpu_custom_call.1} parent=1 // pred_region
      %58 = vsyncadd [#allocation9], 0
      %s59 = sshll.u32 %s3, 4
      %s60 = int_to_ptr.hbm [resolvable:$true] %s59
      %s61 = sshll.u32 [#allocation8], 4
      %s62 = int_to_ptr.vmem [resolvable:$true] %s61
      %67 = dma.hbm_to_vmem [thread:$0]  %s60, 4096, %s62, [#allocation9], 128, 128, 8
    $region17: #{tpu_custom_call.1} parent=1 // pred_fallthru
      _
    // Predicated region
    $region18: #{tpu_custom_call.1} parent=1 // pred_check
      _
    $region19: #{tpu_custom_call.1} parent=1 // pred_check_branch
      %69 = sbr.rel (0) target = $region21
    $region20: #{tpu_custom_call.1} parent=1 // pred_region
      %71 = vsyncadd [#allocation9], 0
      %s72 = sshll.u32 %s4, 4
      %s73 = int_to_ptr.hbm [resolvable:$true] %s72
      %s74 = sshll.u32 [#allocation10], 4
      %s75 = int_to_ptr.vmem [resolvable:$true] %s74
      %80 = dma.hbm_to_vmem [thread:$0]  %s73, 4096, %s75, [#allocation9], 128, 128, 8
    $region21: #{tpu_custom_call.1} parent=1 // pred_fallthru
      _
    // Predicated region
    $region22: #{tpu_custom_call.1} parent=1 // pred_check
      _
    $region23: #{tpu_custom_call.1} parent=1 // pred_check_branch
      %82 = sbr.rel (0) target = $region25
    $region24: #{tpu_custom_call.1} parent=1 // pred_region
      %84 = vsyncadd [#allocation12], 0
      %s85 = sshll.u32 %s5, 4
      %s86 = int_to_ptr.hbm [resolvable:$true] %s85
      %s87 = sshll.u32 [#allocation11], 4
      %s88 = int_to_ptr.vmem [resolvable:$true] %s87
      %93 = dma.hbm_to_vmem [thread:$0]  %s86, 4096, %s88, [#allocation12], 128, 128, 8
    $region25: #{tpu_custom_call.1} parent=1 // pred_fallthru
      _
    // Predicated region
    $region26: #{tpu_custom_call.1} parent=1 // pred_check
      _
    $region27: #{tpu_custom_call.1} parent=1 // pred_check_branch
      %95 = sbr.rel (0) target = $region29
    $region28: #{tpu_custom_call.1} parent=1 // pred_region
      %97 = dma.done [#allocation3], 256
    $region29: #{tpu_custom_call.1} parent=1 // pred_fallthru
      _
    // Predicated region
    $region30: #{tpu_custom_call.1} parent=1 // pred_check
      _
    $region31: #{tpu_custom_call.1} parent=1 // pred_check_branch
      %99 = sbr.rel (0) target = $region33
    $region32: #{tpu_custom_call.1} parent=1 // pred_region
      %101 = dma.done [#allocation6], 256
    $region33: #{tpu_custom_call.1} parent=1 // pred_fallthru
      _
    // Predicated region
    $region34: #{tpu_custom_call.1} parent=1 // pred_check
      _
    $region35: #{tpu_custom_call.1} parent=1 // pred_check_branch
      %103 = sbr.rel (0) target = $region37
    $region36: #{tpu_custom_call.1} parent=1 // pred_region
      %105 = dma.done [#allocation6], 512
    $region37: #{tpu_custom_call.1} parent=1 // pred_fallthru
      _
    // Predicated region
    $region38: #{tpu_custom_call.1} parent=1 // pred_check
      _
    $region39: #{tpu_custom_call.1} parent=1 // pred_check_branch
      %107 = sbr.rel (0) target = $region41
    $region40: #{tpu_custom_call.1} parent=1 // pred_region
      %109 = dma.done [#allocation9], 4096
    $region41: #{tpu_custom_call.1} parent=1 // pred_fallthru
      _
    // Predicated region
    $region42: #{tpu_custom_call.1} parent=1 // pred_check
      _
    $region43: #{tpu_custom_call.1} parent=1 // pred_check_branch
      %111 = sbr.rel (0) target = $region45
    $region44: #{tpu_custom_call.1} parent=1 // pred_region
      %113 = dma.done [#allocation9], 4096
    $region45: #{tpu_custom_call.1} parent=1 // pred_fallthru
      _
    // Predicated region
    $region46: #{tpu_custom_call.1} parent=1 // pred_check
      _
    $region47: #{tpu_custom_call.1} parent=1 // pred_check_branch
      %115 = sbr.rel (0) target = $region49
    $region48: #{tpu_custom_call.1} parent=1 // pred_region
      %117 = dma.done [#allocation12], 4096
    $region49: #{tpu_custom_call.1} parent=1 // pred_fallthru
      _
    %v118 = vld [vmem:[#allocation7] sm:$0xff]
    %v119 = vld [vmem:[#allocation7 + $0x8] sm:$0xff]
    %v120 = vld [vmem:[#allocation7 + $0x10] sm:$0xff]
    %v121 = vld [vmem:[#allocation7 + $0x18] sm:$0xff]
    %v122 = vld [vmem:[#allocation2] sm:$0xff]
    %v123 = vld [vmem:[#allocation2 + $0x8] sm:$0xff]
    %v126 = vrot.slane %v122, 3
    %v127 = vrot.slane %v123, 3
    %vm128 = vcmask 1040384
    %v129 = vsel %vm128, %v122, %v126
    %vm130 = vcmask 1041409
    %v131 = vsel %vm130, %v122, %v126
    %v132 = vrot.slane %v131, 1
    %vm133 = vcmask 1042434
    %v134 = vsel %vm133, %v122, %v126
    %v135 = vrot.slane %v134, 2
    %vm136 = vcmask 1043459
    %v137 = vsel %vm136, %v122, %v126
    %v138 = vrot.slane %v137, 3
    %v139 = vsel %vm128, %v123, %v127
    %v140 = vsel %vm130, %v123, %v127
    %v141 = vrot.slane %v140, 1
    %v142 = vsel %vm133, %v123, %v127
    %v143 = vrot.slane %v142, 2
    %v144 = vsel %vm136, %v123, %v127
    %v145 = vrot.slane %v144, 3
    %v146 = vld [vmem:[#allocation5] sm:$0xff]
    %v147 = vld [vmem:[#allocation5 + $0x8] sm:$0xff]
    %v150 = vrot.slane %v146, 3
    %v151 = vrot.slane %v147, 3
    %v152 = vsel %vm128, %v146, %v150
    %v153 = vsel %vm130, %v146, %v150
    %v154 = vrot.slane %v153, 1
    %v155 = vsel %vm133, %v146, %v150
    %v156 = vrot.slane %v155, 2
    %v157 = vsel %vm136, %v146, %v150
    %v158 = vrot.slane %v157, 3
    %v159 = vsel %vm128, %v147, %v151
    %v160 = vsel %vm130, %v147, %v151
    %v161 = vrot.slane %v160, 1
    %v162 = vsel %vm133, %v147, %v151
    %v163 = vrot.slane %v162, 2
    %v164 = vsel %vm136, %v147, %v151
    %v165 = vrot.slane %v164, 3
    %v166 = vperm.slane %v129, 0
    %v167 = vperm.slane %v129, 1
    %v168 = vperm.slane %v132, 0
    %v169 = vperm.slane %v132, 1
    %v170 = vperm.slane %v135, 0
    %v171 = vperm.slane %v135, 1
    %v172 = vperm.slane %v138, 0
    %v173 = vperm.slane %v138, 1
    %v174 = vperm.slane %v139, 0
    %v175 = vperm.slane %v139, 1
    %v176 = vperm.slane %v141, 0
    %v177 = vperm.slane %v141, 1
    %v178 = vperm.slane %v143, 0
    %v179 = vperm.slane %v143, 1
    %v180 = vperm.slane %v145, 0
    %v181 = vperm.slane %v145, 1
    %v198 = vmul.f32 %v166, %v118
    %v199 = vmul.f32 %v167, %v119
    %v200 = vmul.f32 %v166, %v120
    %v201 = vmul.f32 %v167, %v121
    %v202 = vmul.f32 %v168, %v118
    %v203 = vmul.f32 %v169, %v119
    %v204 = vmul.f32 %v168, %v120
    %v205 = vmul.f32 %v169, %v121
    %v206 = vmul.f32 %v170, %v118
    %v207 = vmul.f32 %v171, %v119
    %v208 = vmul.f32 %v170, %v120
    %v209 = vmul.f32 %v171, %v121
    %v210 = vmul.f32 %v172, %v118
    %v211 = vmul.f32 %v173, %v119
    %v212 = vmul.f32 %v172, %v120
    %v213 = vmul.f32 %v173, %v121
    %v214 = vmul.f32 %v174, %v118
    %v215 = vmul.f32 %v175, %v119
    %v216 = vmul.f32 %v174, %v120
    %v217 = vmul.f32 %v175, %v121
    %v218 = vmul.f32 %v176, %v118
    %v219 = vmul.f32 %v177, %v119
    %v220 = vmul.f32 %v176, %v120
    %v221 = vmul.f32 %v177, %v121
    %v222 = vmul.f32 %v178, %v118
    %v223 = vmul.f32 %v179, %v119
    %v224 = vmul.f32 %v178, %v120
    %v225 = vmul.f32 %v179, %v121
    %v226 = vmul.f32 %v180, %v118
    %v227 = vmul.f32 %v181, %v119
    %v228 = vmul.f32 %v180, %v120
    %v229 = vmul.f32 %v181, %v121
    %v230 = vperm.slane %v152, 0
    %v231 = vperm.slane %v152, 1
    %v232 = vperm.slane %v154, 0
    %v233 = vperm.slane %v154, 1
    %v234 = vperm.slane %v156, 0
    %v235 = vperm.slane %v156, 1
    %v236 = vperm.slane %v158, 0
    %v237 = vperm.slane %v158, 1
    %v238 = vperm.slane %v159, 0
    %v239 = vperm.slane %v159, 1
    %v240 = vperm.slane %v161, 0
    %v241 = vperm.slane %v161, 1
    %v242 = vperm.slane %v163, 0
    %v243 = vperm.slane %v163, 1
    %v244 = vperm.slane %v165, 0
    %v245 = vperm.slane %v165, 1
    %v262 = vmul.f32 %v230, %v118
    %v263 = vmul.f32 %v231, %v119
    %v264 = vmul.f32 %v230, %v120
    %v265 = vmul.f32 %v231, %v121
    %v266 = vmul.f32 %v232, %v118
    %v267 = vmul.f32 %v233, %v119
    %v268 = vmul.f32 %v232, %v120
    %v269 = vmul.f32 %v233, %v121
    %v270 = vmul.f32 %v234, %v118
    %v271 = vmul.f32 %v235, %v119
    %v272 = vmul.f32 %v234, %v120
    %v273 = vmul.f32 %v235, %v121
    %v274 = vmul.f32 %v236, %v118
    %v275 = vmul.f32 %v237, %v119
    %v276 = vmul.f32 %v236, %v120
    %v277 = vmul.f32 %v237, %v121
    %v278 = vmul.f32 %v238, %v118
    %v279 = vmul.f32 %v239, %v119
    %v280 = vmul.f32 %v238, %v120
    %v281 = vmul.f32 %v239, %v121
    %v282 = vmul.f32 %v240, %v118
    %v283 = vmul.f32 %v241, %v119
    %v284 = vmul.f32 %v240, %v120
    %v285 = vmul.f32 %v241, %v121
    %v286 = vmul.f32 %v242, %v118
    %v287 = vmul.f32 %v243, %v119
    %v288 = vmul.f32 %v242, %v120
    %v289 = vmul.f32 %v243, %v121
    %v290 = vmul.f32 %v244, %v118
    %v291 = vmul.f32 %v245, %v119
    %v292 = vmul.f32 %v244, %v120
    %v293 = vmul.f32 %v245, %v121
    %v294 = vpack.c.bf16 %v200, %v198
    %v295 = vpack.c.bf16 %v201, %v199
    %v296 = vpack.c.bf16 %v204, %v202
    %v297 = vpack.c.bf16 %v205, %v203
    %v298 = vpack.c.bf16 %v208, %v206
    %v299 = vpack.c.bf16 %v209, %v207
    %v300 = vpack.c.bf16 %v212, %v210
    %v301 = vpack.c.bf16 %v213, %v211
    %v302 = vpack.c.bf16 %v216, %v214
    %v303 = vpack.c.bf16 %v217, %v215
    %v304 = vpack.c.bf16 %v220, %v218
    %v305 = vpack.c.bf16 %v221, %v219
    %v306 = vpack.c.bf16 %v224, %v222
    %v307 = vpack.c.bf16 %v225, %v223
    %v308 = vpack.c.bf16 %v228, %v226
    %v309 = vpack.c.bf16 %v229, %v227
    %v310 = vpack.c.bf16 %v264, %v262
    %v311 = vpack.c.bf16 %v265, %v263
    %v312 = vpack.c.bf16 %v268, %v266
    %v313 = vpack.c.bf16 %v269, %v267
    %v314 = vpack.c.bf16 %v272, %v270
    %v315 = vpack.c.bf16 %v273, %v271
    %v316 = vpack.c.bf16 %v276, %v274
    %v317 = vpack.c.bf16 %v277, %v275
    %v318 = vpack.c.bf16 %v280, %v278
    %v319 = vpack.c.bf16 %v281, %v279
    %v320 = vpack.c.bf16 %v284, %v282
    %v321 = vpack.c.bf16 %v285, %v283
    %v322 = vpack.c.bf16 %v288, %v286
    %v323 = vpack.c.bf16 %v289, %v287
    %v324 = vpack.c.bf16 %v292, %v290
    %v325 = vpack.c.bf16 %v293, %v291
    %v326 = vadd.f32 %v198, %v262
    %v327 = vadd.f32 %v199, %v263
    %v328 = vadd.f32 %v200, %v264
    %v329 = vadd.f32 %v201, %v265
    %v330 = vadd.f32 %v202, %v266
    %v331 = vadd.f32 %v203, %v267
    %v332 = vadd.f32 %v204, %v268
    %v333 = vadd.f32 %v205, %v269
    %v334 = vadd.f32 %v206, %v270
    %v335 = vadd.f32 %v207, %v271
    %v336 = vadd.f32 %v208, %v272
    %v337 = vadd.f32 %v209, %v273
    %v338 = vadd.f32 %v210, %v274
    %v339 = vadd.f32 %v211, %v275
    %v340 = vadd.f32 %v212, %v276
    %v341 = vadd.f32 %v213, %v277
    %v342 = vadd.f32 %v214, %v278
    %v343 = vadd.f32 %v215, %v279
    %v344 = vadd.f32 %v216, %v280
    %v345 = vadd.f32 %v217, %v281
    %v346 = vadd.f32 %v218, %v282
    %v347 = vadd.f32 %v219, %v283
    %v348 = vadd.f32 %v220, %v284
    %v349 = vadd.f32 %v221, %v285
    %v350 = vadd.f32 %v222, %v286
    %v351 = vadd.f32 %v223, %v287
    %v352 = vadd.f32 %v224, %v288
    %v353 = vadd.f32 %v225, %v289
    %v354 = vadd.f32 %v226, %v290
    %v355 = vadd.f32 %v227, %v291
    %v356 = vadd.f32 %v228, %v292
    %v357 = vadd.f32 %v229, %v293
    %v358 = vpack.c.bf16 %v328, %v326
    %v359 = vpack.c.bf16 %v329, %v327
    %v360 = vpack.c.bf16 %v332, %v330
    %v361 = vpack.c.bf16 %v333, %v331
    %v362 = vpack.c.bf16 %v336, %v334
    %v363 = vpack.c.bf16 %v337, %v335
    %v364 = vpack.c.bf16 %v340, %v338
    %v365 = vpack.c.bf16 %v341, %v339
    %v366 = vpack.c.bf16 %v344, %v342
    %v367 = vpack.c.bf16 %v345, %v343
    %v368 = vpack.c.bf16 %v348, %v346
    %v369 = vpack.c.bf16 %v349, %v347
    %v370 = vpack.c.bf16 %v352, %v350
    %v371 = vpack.c.bf16 %v353, %v351
    %v372 = vpack.c.bf16 %v356, %v354
    %v373 = vpack.c.bf16 %v357, %v355
    %v374 = vld [vmem:[#allocation8] sm:$0xff]
    %v375 = vld [vmem:[#allocation8 + $0x8] sm:$0xff]
    %v376 = vld [vmem:[#allocation8 + $0x10] sm:$0xff]
    %v377 = vld [vmem:[#allocation8 + $0x18] sm:$0xff]
    %v378 = vld [vmem:[#allocation8 + $0x20] sm:$0xff]
    %v379 = vld [vmem:[#allocation8 + $0x28] sm:$0xff]
    %v380 = vld [vmem:[#allocation8 + $0x30] sm:$0xff]
    %v381 = vld [vmem:[#allocation8 + $0x38] sm:$0xff]
    %v382 = vld [vmem:[#allocation8 + $0x40] sm:$0xff]
    %v383 = vld [vmem:[#allocation8 + $0x48] sm:$0xff]
    %v384 = vld [vmem:[#allocation8 + $0x50] sm:$0xff]
    %v385 = vld [vmem:[#allocation8 + $0x58] sm:$0xff]
    %v386 = vld [vmem:[#allocation8 + $0x60] sm:$0xff]
    %v387 = vld [vmem:[#allocation8 + $0x68] sm:$0xff]
    %v388 = vld [vmem:[#allocation8 + $0x70] sm:$0xff]
    %v389 = vld [vmem:[#allocation8 + $0x78] sm:$0xff]
    %v390 = vld [vmem:[#allocation8 + $0x80] sm:$0xff]
    %v391 = vld [vmem:[#allocation8 + $0x88] sm:$0xff]
    %v392 = vld [vmem:[#allocation8 + $0x90] sm:$0xff]
    %v393 = vld [vmem:[#allocation8 + $0x98] sm:$0xff]
    %v394 = vld [vmem:[#allocation8 + $0xa0] sm:$0xff]
    %v395 = vld [vmem:[#allocation8 + $0xa8] sm:$0xff]
    %v396 = vld [vmem:[#allocation8 + $0xb0] sm:$0xff]
    %v397 = vld [vmem:[#allocation8 + $0xb8] sm:$0xff]
    %v398 = vld [vmem:[#allocation8 + $0xc0] sm:$0xff]
    %v399 = vld [vmem:[#allocation8 + $0xc8] sm:$0xff]
    %v400 = vld [vmem:[#allocation8 + $0xd0] sm:$0xff]
    %v401 = vld [vmem:[#allocation8 + $0xd8] sm:$0xff]
    %v402 = vld [vmem:[#allocation8 + $0xe0] sm:$0xff]
    %v403 = vld [vmem:[#allocation8 + $0xe8] sm:$0xff]
    %v404 = vld [vmem:[#allocation8 + $0xf0] sm:$0xff]
    %v405 = vld [vmem:[#allocation8 + $0xf8] sm:$0xff]
    %v406 = vld [vmem:[#allocation10] sm:$0xff]
    %v407 = vld [vmem:[#allocation10 + $0x8] sm:$0xff]
    %v408 = vld [vmem:[#allocation10 + $0x10] sm:$0xff]
    %v409 = vld [vmem:[#allocation10 + $0x18] sm:$0xff]
    %v410 = vld [vmem:[#allocation10 + $0x20] sm:$0xff]
    %v411 = vld [vmem:[#allocation10 + $0x28] sm:$0xff]
    %v412 = vld [vmem:[#allocation10 + $0x30] sm:$0xff]
    %v413 = vld [vmem:[#allocation10 + $0x38] sm:$0xff]
    %v414 = vld [vmem:[#allocation10 + $0x40] sm:$0xff]
    %v415 = vld [vmem:[#allocation10 + $0x48] sm:$0xff]
    %v416 = vld [vmem:[#allocation10 + $0x50] sm:$0xff]
    %v417 = vld [vmem:[#allocation10 + $0x58] sm:$0xff]
    %v418 = vld [vmem:[#allocation10 + $0x60] sm:$0xff]
    %v419 = vld [vmem:[#allocation10 + $0x68] sm:$0xff]
    %v420 = vld [vmem:[#allocation10 + $0x70] sm:$0xff]
    %v421 = vld [vmem:[#allocation10 + $0x78] sm:$0xff]
    %v422 = vld [vmem:[#allocation10 + $0x80] sm:$0xff]
    %v423 = vld [vmem:[#allocation10 + $0x88] sm:$0xff]
    %v424 = vld [vmem:[#allocation10 + $0x90] sm:$0xff]
    %v425 = vld [vmem:[#allocation10 + $0x98] sm:$0xff]
    %v426 = vld [vmem:[#allocation10 + $0xa0] sm:$0xff]
    %v427 = vld [vmem:[#allocation10 + $0xa8] sm:$0xff]
    %v428 = vld [vmem:[#allocation10 + $0xb0] sm:$0xff]
    %v429 = vld [vmem:[#allocation10 + $0xb8] sm:$0xff]
    %v430 = vld [vmem:[#allocation10 + $0xc0] sm:$0xff]
    %v431 = vld [vmem:[#allocation10 + $0xc8] sm:$0xff]
    %v432 = vld [vmem:[#allocation10 + $0xd0] sm:$0xff]
    %v433 = vld [vmem:[#allocation10 + $0xd8] sm:$0xff]
    %v434 = vld [vmem:[#allocation10 + $0xe0] sm:$0xff]
    %v435 = vld [vmem:[#allocation10 + $0xe8] sm:$0xff]
    %v436 = vld [vmem:[#allocation10 + $0xf0] sm:$0xff]
    %v437 = vld [vmem:[#allocation10 + $0xf8] sm:$0xff]
    %v438 = vld [vmem:[#allocation11] sm:$0xff]
    %v439 = vld [vmem:[#allocation11 + $0x8] sm:$0xff]
    %v440 = vld [vmem:[#allocation11 + $0x10] sm:$0xff]
    %v441 = vld [vmem:[#allocation11 + $0x18] sm:$0xff]
    %v442 = vld [vmem:[#allocation11 + $0x20] sm:$0xff]
    %v443 = vld [vmem:[#allocation11 + $0x28] sm:$0xff]
    %v444 = vld [vmem:[#allocation11 + $0x30] sm:$0xff]
    %v445 = vld [vmem:[#allocation11 + $0x38] sm:$0xff]
    %v446 = vld [vmem:[#allocation11 + $0x40] sm:$0xff]
    %v447 = vld [vmem:[#allocation11 + $0x48] sm:$0xff]
    %v448 = vld [vmem:[#allocation11 + $0x50] sm:$0xff]
    %v449 = vld [vmem:[#allocation11 + $0x58] sm:$0xff]
    %v450 = vld [vmem:[#allocation11 + $0x60] sm:$0xff]
    %v451 = vld [vmem:[#allocation11 + $0x68] sm:$0xff]
    %v452 = vld [vmem:[#allocation11 + $0x70] sm:$0xff]
    %v453 = vld [vmem:[#allocation11 + $0x78] sm:$0xff]
    %v454 = vld [vmem:[#allocation11 + $0x80] sm:$0xff]
    %v455 = vld [vmem:[#allocation11 + $0x88] sm:$0xff]
    %v456 = vld [vmem:[#allocation11 + $0x90] sm:$0xff]
    %v457 = vld [vmem:[#allocation11 + $0x98] sm:$0xff]
    %v458 = vld [vmem:[#allocation11 + $0xa0] sm:$0xff]
    %v459 = vld [vmem:[#allocation11 + $0xa8] sm:$0xff]
    %v460 = vld [vmem:[#allocation11 + $0xb0] sm:$0xff]
    %v461 = vld [vmem:[#allocation11 + $0xb8] sm:$0xff]
    %v462 = vld [vmem:[#allocation11 + $0xc0] sm:$0xff]
    %v463 = vld [vmem:[#allocation11 + $0xc8] sm:$0xff]
    %v464 = vld [vmem:[#allocation11 + $0xd0] sm:$0xff]
    %v465 = vld [vmem:[#allocation11 + $0xd8] sm:$0xff]
    %v466 = vld [vmem:[#allocation11 + $0xe0] sm:$0xff]
    %v467 = vld [vmem:[#allocation11 + $0xe8] sm:$0xff]
    %v468 = vld [vmem:[#allocation11 + $0xf0] sm:$0xff]
    %v469 = vld [vmem:[#allocation11 + $0xf8] sm:$0xff]
    %v502 = vunpack.c.l.b16 %v374
    %v503 = vunpack.c.h.b16 %v374
    %v504 = vunpack.c.l.b16 %v375
    %v505 = vunpack.c.h.b16 %v375
    %v506 = vunpack.c.l.b16 %v376
    %v507 = vunpack.c.h.b16 %v376
    %v508 = vunpack.c.l.b16 %v377
    %v509 = vunpack.c.h.b16 %v377
    %v510 = vunpack.c.l.b16 %v378
    %v511 = vunpack.c.h.b16 %v378
    %v512 = vunpack.c.l.b16 %v379
    %v513 = vunpack.c.h.b16 %v379
    %v514 = vunpack.c.l.b16 %v380
    %v515 = vunpack.c.h.b16 %v380
    %v516 = vunpack.c.l.b16 %v381
    %v517 = vunpack.c.h.b16 %v381
    %v518 = vunpack.c.l.b16 %v382
    %v519 = vunpack.c.h.b16 %v382
    %v520 = vunpack.c.l.b16 %v383
    %v521 = vunpack.c.h.b16 %v383
    %v522 = vunpack.c.l.b16 %v384
    %v523 = vunpack.c.h.b16 %v384
    %v524 = vunpack.c.l.b16 %v385
    %v525 = vunpack.c.h.b16 %v385
    %v526 = vunpack.c.l.b16 %v386
    %v527 = vunpack.c.h.b16 %v386
    %v528 = vunpack.c.l.b16 %v387
    %v529 = vunpack.c.h.b16 %v387
    %v530 = vunpack.c.l.b16 %v388
    %v531 = vunpack.c.h.b16 %v388
    %v532 = vunpack.c.l.b16 %v389
    %v533 = vunpack.c.h.b16 %v389
    %v534 = vunpack.c.l.b16 %v390
    %v535 = vunpack.c.h.b16 %v390
    %v536 = vunpack.c.l.b16 %v391
    %v537 = vunpack.c.h.b16 %v391
    %v538 = vunpack.c.l.b16 %v392
    %v539 = vunpack.c.h.b16 %v392
    %v540 = vunpack.c.l.b16 %v393
    %v541 = vunpack.c.h.b16 %v393
    %v542 = vunpack.c.l.b16 %v394
    %v543 = vunpack.c.h.b16 %v394
    %v544 = vunpack.c.l.b16 %v395
    %v545 = vunpack.c.h.b16 %v395
    %v546 = vunpack.c.l.b16 %v396
    %v547 = vunpack.c.h.b16 %v396
    %v548 = vunpack.c.l.b16 %v397
    %v549 = vunpack.c.h.b16 %v397
    %v550 = vunpack.c.l.b16 %v398
    %v551 = vunpack.c.h.b16 %v398
    %v552 = vunpack.c.l.b16 %v399
    %v553 = vunpack.c.h.b16 %v399
    %v554 = vunpack.c.l.b16 %v400
    %v555 = vunpack.c.h.b16 %v400
    %v556 = vunpack.c.l.b16 %v401
    %v557 = vunpack.c.h.b16 %v401
    %v558 = vunpack.c.l.b16 %v402
    %v559 = vunpack.c.h.b16 %v402
    %v560 = vunpack.c.l.b16 %v403
    %v561 = vunpack.c.h.b16 %v403
    %v562 = vunpack.c.l.b16 %v404
    %v563 = vunpack.c.h.b16 %v404
    %v564 = vunpack.c.l.b16 %v405
    %v565 = vunpack.c.h.b16 %v405
    %v566 = vpack.c.b16 %v504, %v502
    %v567 = vpack.c.b16 %v505, %v503
    %v568 = vpack.c.b16 %v508, %v506
    %v569 = vpack.c.b16 %v509, %v507
    %v570 = vpack.c.b16 %v512, %v510
    %v571 = vpack.c.b16 %v513, %v511
    %v572 = vpack.c.b16 %v516, %v514
    %v573 = vpack.c.b16 %v517, %v515
    %v574 = vpack.c.b16 %v520, %v518
    %v575 = vpack.c.b16 %v521, %v519
    %v576 = vpack.c.b16 %v524, %v522
    %v577 = vpack.c.b16 %v525, %v523
    %v578 = vpack.c.b16 %v528, %v526
    %v579 = vpack.c.b16 %v529, %v527
    %v580 = vpack.c.b16 %v532, %v530
    %v581 = vpack.c.b16 %v533, %v531
    %v582 = vpack.c.b16 %v536, %v534
    %v583 = vpack.c.b16 %v537, %v535
    %v584 = vpack.c.b16 %v540, %v538
    %v585 = vpack.c.b16 %v541, %v539
    %v586 = vpack.c.b16 %v544, %v542
    %v587 = vpack.c.b16 %v545, %v543
    %v588 = vpack.c.b16 %v548, %v546
    %v589 = vpack.c.b16 %v549, %v547
    %v590 = vpack.c.b16 %v552, %v550
    %v591 = vpack.c.b16 %v553, %v551
    %v592 = vpack.c.b16 %v556, %v554
    %v593 = vpack.c.b16 %v557, %v555
    %v594 = vpack.c.b16 %v560, %v558
    %v595 = vpack.c.b16 %v561, %v559
    %v596 = vpack.c.b16 %v564, %v562
    %v597 = vpack.c.b16 %v565, %v563
    %630 = vmatpush.bf16.msra.mxu0 %v580
    %631 = vmatpush.bf16.msra.mxu0 %v578
    %632 = vmatpush.bf16.msra.mxu0 %v576
    %633 = vmatpush.bf16.msra.mxu0 %v574
    %634 = vmatpush.bf16.msra.mxu0 %v572
    %635 = vmatpush.bf16.msra.mxu0 %v570
    %636 = vmatpush.bf16.msra.mxu0 %v568
    %637 = vmatpush.bf16.msra.mxu0 %v566
    %638 = vmatmul.bf16.gmra.mxu0 %v294
    %v639 = vpop.f32.mrf.mxu0
    %v640 = vadd.f32 0.0, %v639
    %v641 = vpop.f32.mrf.mxu0
    %v642 = vadd.f32 0.0, %v641
    %643 = vmatmul.bf16.gmra.mxu0 %v296
    %v644 = vpop.f32.mrf.mxu0
    %v645 = vadd.f32 0.0, %v644
    %v646 = vpop.f32.mrf.mxu0
    %v647 = vadd.f32 0.0, %v646
    %648 = vmatmul.bf16.gmra.mxu0 %v298
    %v649 = vpop.f32.mrf.mxu0
    %v650 = vadd.f32 0.0, %v649
    %v651 = vpop.f32.mrf.mxu0
    %v652 = vadd.f32 0.0, %v651
    %653 = vmatmul.bf16.gmra.mxu0 %v300
    %v654 = vpop.f32.mrf.mxu0
    %v655 = vadd.f32 0.0, %v654
    %v656 = vpop.f32.mrf.mxu0
    %v657 = vadd.f32 0.0, %v656
    %658 = vmatmul.bf16.gmra.mxu0 %v302
    %v659 = vpop.f32.mrf.mxu0
    %v660 = vadd.f32 0.0, %v659
    %v661 = vpop.f32.mrf.mxu0
    %v662 = vadd.f32 0.0, %v661
    %663 = vmatmul.bf16.gmra.mxu0 %v304
    %v664 = vpop.f32.mrf.mxu0
    %v665 = vadd.f32 0.0, %v664
    %v666 = vpop.f32.mrf.mxu0
    %v667 = vadd.f32 0.0, %v666
    %668 = vmatmul.bf16.gmra.mxu0 %v306
    %v669 = vpop.f32.mrf.mxu0
    %v670 = vadd.f32 0.0, %v669
    %v671 = vpop.f32.mrf.mxu0
    %v672 = vadd.f32 0.0, %v671
    %673 = vmatmul.bf16.gmra.mxu0 %v308
    %v674 = vpop.f32.mrf.mxu0
    %v675 = vadd.f32 0.0, %v674
    %v676 = vpop.f32.mrf.mxu0
    %v677 = vadd.f32 0.0, %v676
    %678 = vdwg.mxu0
    %679 = vmatpush.bf16.msra.mxu0 %v596
    %680 = vmatpush.bf16.msra.mxu0 %v594
    %681 = vmatpush.bf16.msra.mxu0 %v592
    %682 = vmatpush.bf16.msra.mxu0 %v590
    %683 = vmatpush.bf16.msra.mxu0 %v588
    %684 = vmatpush.bf16.msra.mxu0 %v586
    %685 = vmatpush.bf16.msra.mxu0 %v584
    %686 = vmatpush.bf16.msra.mxu0 %v582
    %687 = vmatmul.bf16.gmra.mxu0 %v295
    %v688 = vpop.f32.mrf.mxu0
    %v689 = vadd.f32 %v640, %v688
    %v690 = vpop.f32.mrf.mxu0
    %v691 = vadd.f32 %v642, %v690
    %692 = vmatmul.bf16.gmra.mxu0 %v297
    %v693 = vpop.f32.mrf.mxu0
    %v694 = vadd.f32 %v645, %v693
    %v695 = vpop.f32.mrf.mxu0
    %v696 = vadd.f32 %v647, %v695
    %697 = vmatmul.bf16.gmra.mxu0 %v299
    %v698 = vpop.f32.mrf.mxu0
    %v699 = vadd.f32 %v650, %v698
    %v700 = vpop.f32.mrf.mxu0
    %v701 = vadd.f32 %v652, %v700
    %702 = vmatmul.bf16.gmra.mxu0 %v301
    %v703 = vpop.f32.mrf.mxu0
    %v704 = vadd.f32 %v655, %v703
    %v705 = vpop.f32.mrf.mxu0
    %v706 = vadd.f32 %v657, %v705
    %707 = vmatmul.bf16.gmra.mxu0 %v303
    %v708 = vpop.f32.mrf.mxu0
    %v709 = vadd.f32 %v660, %v708
    %v710 = vpop.f32.mrf.mxu0
    %v711 = vadd.f32 %v662, %v710
    %712 = vmatmul.bf16.gmra.mxu0 %v305
    %v713 = vpop.f32.mrf.mxu0
    %v714 = vadd.f32 %v665, %v713
    %v715 = vpop.f32.mrf.mxu0
    %v716 = vadd.f32 %v667, %v715
    %717 = vmatmul.bf16.gmra.mxu0 %v307
    %v718 = vpop.f32.mrf.mxu0
    %v719 = vadd.f32 %v670, %v718
    %v720 = vpop.f32.mrf.mxu0
    %v721 = vadd.f32 %v672, %v720
    %722 = vmatmul.bf16.gmra.mxu0 %v309
    %v723 = vpop.f32.mrf.mxu0
    %v724 = vadd.f32 %v675, %v723
    %v725 = vpop.f32.mrf.mxu0
    %v726 = vadd.f32 %v677, %v725
    %727 = vdwg.mxu0
    %728 = vmatpush.bf16.msra.mxu0 %v581
    %729 = vmatpush.bf16.msra.mxu0 %v579
    %730 = vmatpush.bf16.msra.mxu0 %v577
    %731 = vmatpush.bf16.msra.mxu0 %v575
    %732 = vmatpush.bf16.msra.mxu0 %v573
    %733 = vmatpush.bf16.msra.mxu0 %v571
    %734 = vmatpush.bf16.msra.mxu0 %v569
    %735 = vmatpush.bf16.msra.mxu0 %v567
    %736 = vmatmul.bf16.gmra.mxu0 %v294
    %v737 = vpop.f32.mrf.mxu0
    %v738 = vadd.f32 0.0, %v737
    %v739 = vpop.f32.mrf.mxu0
    %v740 = vadd.f32 0.0, %v739
    %741 = vmatmul.bf16.gmra.mxu0 %v296
    %v742 = vpop.f32.mrf.mxu0
    %v743 = vadd.f32 0.0, %v742
    %v744 = vpop.f32.mrf.mxu0
    %v745 = vadd.f32 0.0, %v744
    %746 = vmatmul.bf16.gmra.mxu0 %v298
    %v747 = vpop.f32.mrf.mxu0
    %v748 = vadd.f32 0.0, %v747
    %v749 = vpop.f32.mrf.mxu0
    %v750 = vadd.f32 0.0, %v749
    %751 = vmatmul.bf16.gmra.mxu0 %v300
    %v752 = vpop.f32.mrf.mxu0
    %v753 = vadd.f32 0.0, %v752
    %v754 = vpop.f32.mrf.mxu0
    %v755 = vadd.f32 0.0, %v754
    %756 = vmatmul.bf16.gmra.mxu0 %v302
    %v757 = vpop.f32.mrf.mxu0
    %v758 = vadd.f32 0.0, %v757
    %v759 = vpop.f32.mrf.mxu0
    %v760 = vadd.f32 0.0, %v759
    %761 = vmatmul.bf16.gmra.mxu0 %v304
    %v762 = vpop.f32.mrf.mxu0
    %v763 = vadd.f32 0.0, %v762
    %v764 = vpop.f32.mrf.mxu0
    %v765 = vadd.f32 0.0, %v764
    %766 = vmatmul.bf16.gmra.mxu0 %v306
    %v767 = vpop.f32.mrf.mxu0
    %v768 = vadd.f32 0.0, %v767
    %v769 = vpop.f32.mrf.mxu0
    %v770 = vadd.f32 0.0, %v769
    %771 = vmatmul.bf16.gmra.mxu0 %v308
    %v772 = vpop.f32.mrf.mxu0
    %v773 = vadd.f32 0.0, %v772
    %v774 = vpop.f32.mrf.mxu0
    %v775 = vadd.f32 0.0, %v774
    %776 = vdwg.mxu0
    %777 = vmatpush.bf16.msra.mxu0 %v597
    %778 = vmatpush.bf16.msra.mxu0 %v595
    %779 = vmatpush.bf16.msra.mxu0 %v593
    %780 = vmatpush.bf16.msra.mxu0 %v591
    %781 = vmatpush.bf16.msra.mxu0 %v589
    %782 = vmatpush.bf16.msra.mxu0 %v587
    %783 = vmatpush.bf16.msra.mxu0 %v585
    %784 = vmatpush.bf16.msra.mxu0 %v583
    %785 = vmatmul.bf16.gmra.mxu0 %v295
    %v786 = vpop.f32.mrf.mxu0
    %v787 = vadd.f32 %v738, %v786
    %v788 = vpop.f32.mrf.mxu0
    %v789 = vadd.f32 %v740, %v788
    %790 = vmatmul.bf16.gmra.mxu0 %v297
    %v791 = vpop.f32.mrf.mxu0
    %v792 = vadd.f32 %v743, %v791
    %v793 = vpop.f32.mrf.mxu0
    %v794 = vadd.f32 %v745, %v793
    %795 = vmatmul.bf16.gmra.mxu0 %v299
    %v796 = vpop.f32.mrf.mxu0
    %v797 = vadd.f32 %v748, %v796
    %v798 = vpop.f32.mrf.mxu0
    %v799 = vadd.f32 %v750, %v798
    %800 = vmatmul.bf16.gmra.mxu0 %v301
    %v801 = vpop.f32.mrf.mxu0
    %v802 = vadd.f32 %v753, %v801
    %v803 = vpop.f32.mrf.mxu0
    %v804 = vadd.f32 %v755, %v803
    %805 = vmatmul.bf16.gmra.mxu0 %v303
    %v806 = vpop.f32.mrf.mxu0
    %v807 = vadd.f32 %v758, %v806
    %v808 = vpop.f32.mrf.mxu0
    %v809 = vadd.f32 %v760, %v808
    %810 = vmatmul.bf16.gmra.mxu0 %v305
    %v811 = vpop.f32.mrf.mxu0
    %v812 = vadd.f32 %v763, %v811
    %v813 = vpop.f32.mrf.mxu0
    %v814 = vadd.f32 %v765, %v813
    %815 = vmatmul.bf16.gmra.mxu0 %v307
    %v816 = vpop.f32.mrf.mxu0
    %v817 = vadd.f32 %v768, %v816
    %v818 = vpop.f32.mrf.mxu0
    %v819 = vadd.f32 %v770, %v818
    %820 = vmatmul.bf16.gmra.mxu0 %v309
    %v821 = vpop.f32.mrf.mxu0
    %v822 = vadd.f32 %v773, %v821
    %v823 = vpop.f32.mrf.mxu0
    %v824 = vadd.f32 %v775, %v823
    %825 = vdwg.mxu0
    %v858 = vunpack.c.l.b16 %v406
    %v859 = vunpack.c.h.b16 %v406
    %v860 = vunpack.c.l.b16 %v407
    %v861 = vunpack.c.h.b16 %v407
    %v862 = vunpack.c.l.b16 %v408
    %v863 = vunpack.c.h.b16 %v408
    %v864 = vunpack.c.l.b16 %v409
    %v865 = vunpack.c.h.b16 %v409
    %v866 = vunpack.c.l.b16 %v410
    %v867 = vunpack.c.h.b16 %v410
    %v868 = vunpack.c.l.b16 %v411
    %v869 = vunpack.c.h.b16 %v411
    %v870 = vunpack.c.l.b16 %v412
    %v871 = vunpack.c.h.b16 %v412
    %v872 = vunpack.c.l.b16 %v413
    %v873 = vunpack.c.h.b16 %v413
    %v874 = vunpack.c.l.b16 %v414
    %v875 = vunpack.c.h.b16 %v414
    %v876 = vunpack.c.l.b16 %v415
    %v877 = vunpack.c.h.b16 %v415
    %v878 = vunpack.c.l.b16 %v416
    %v879 = vunpack.c.h.b16 %v416
    %v880 = vunpack.c.l.b16 %v417
    %v881 = vunpack.c.h.b16 %v417
    %v882 = vunpack.c.l.b16 %v418
    %v883 = vunpack.c.h.b16 %v418
    %v884 = vunpack.c.l.b16 %v419
    %v885 = vunpack.c.h.b16 %v419
    %v886 = vunpack.c.l.b16 %v420
    %v887 = vunpack.c.h.b16 %v420
    %v888 = vunpack.c.l.b16 %v421
    %v889 = vunpack.c.h.b16 %v421
    %v890 = vunpack.c.l.b16 %v422
    %v891 = vunpack.c.h.b16 %v422
    %v892 = vunpack.c.l.b16 %v423
    %v893 = vunpack.c.h.b16 %v423
    %v894 = vunpack.c.l.b16 %v424
    %v895 = vunpack.c.h.b16 %v424
    %v896 = vunpack.c.l.b16 %v425
    %v897 = vunpack.c.h.b16 %v425
    %v898 = vunpack.c.l.b16 %v426
    %v899 = vunpack.c.h.b16 %v426
    %v900 = vunpack.c.l.b16 %v427
    %v901 = vunpack.c.h.b16 %v427
    %v902 = vunpack.c.l.b16 %v428
    %v903 = vunpack.c.h.b16 %v428
    %v904 = vunpack.c.l.b16 %v429
    %v905 = vunpack.c.h.b16 %v429
    %v906 = vunpack.c.l.b16 %v430
    %v907 = vunpack.c.h.b16 %v430
    %v908 = vunpack.c.l.b16 %v431
    %v909 = vunpack.c.h.b16 %v431
    %v910 = vunpack.c.l.b16 %v432
    %v911 = vunpack.c.h.b16 %v432
    %v912 = vunpack.c.l.b16 %v433
    %v913 = vunpack.c.h.b16 %v433
    %v914 = vunpack.c.l.b16 %v434
    %v915 = vunpack.c.h.b16 %v434
    %v916 = vunpack.c.l.b16 %v435
    %v917 = vunpack.c.h.b16 %v435
    %v918 = vunpack.c.l.b16 %v436
    %v919 = vunpack.c.h.b16 %v436
    %v920 = vunpack.c.l.b16 %v437
    %v921 = vunpack.c.h.b16 %v437
    %v922 = vpack.c.b16 %v860, %v858
    %v923 = vpack.c.b16 %v861, %v859
    %v924 = vpack.c.b16 %v864, %v862
    %v925 = vpack.c.b16 %v865, %v863
    %v926 = vpack.c.b16 %v868, %v866
    %v927 = vpack.c.b16 %v869, %v867
    %v928 = vpack.c.b16 %v872, %v870
    %v929 = vpack.c.b16 %v873, %v871
    %v930 = vpack.c.b16 %v876, %v874
    %v931 = vpack.c.b16 %v877, %v875
    %v932 = vpack.c.b16 %v880, %v878
    %v933 = vpack.c.b16 %v881, %v879
    %v934 = vpack.c.b16 %v884, %v882
    %v935 = vpack.c.b16 %v885, %v883
    %v936 = vpack.c.b16 %v888, %v886
    %v937 = vpack.c.b16 %v889, %v887
    %v938 = vpack.c.b16 %v892, %v890
    %v939 = vpack.c.b16 %v893, %v891
    %v940 = vpack.c.b16 %v896, %v894
    %v941 = vpack.c.b16 %v897, %v895
    %v942 = vpack.c.b16 %v900, %v898
    %v943 = vpack.c.b16 %v901, %v899
    %v944 = vpack.c.b16 %v904, %v902
    %v945 = vpack.c.b16 %v905, %v903
    %v946 = vpack.c.b16 %v908, %v906
    %v947 = vpack.c.b16 %v909, %v907
    %v948 = vpack.c.b16 %v912, %v910
    %v949 = vpack.c.b16 %v913, %v911
    %v950 = vpack.c.b16 %v916, %v914
    %v951 = vpack.c.b16 %v917, %v915
    %v952 = vpack.c.b16 %v920, %v918
    %v953 = vpack.c.b16 %v921, %v919
    %986 = vmatpush.bf16.msra.mxu0 %v936
    %987 = vmatpush.bf16.msra.mxu0 %v934
    %988 = vmatpush.bf16.msra.mxu0 %v932
    %989 = vmatpush.bf16.msra.mxu0 %v930
    %990 = vmatpush.bf16.msra.mxu0 %v928
    %991 = vmatpush.bf16.msra.mxu0 %v926
    %992 = vmatpush.bf16.msra.mxu0 %v924
    %993 = vmatpush.bf16.msra.mxu0 %v922
    %994 = vmatmul.bf16.gmra.mxu0 %v310
    %v995 = vpop.f32.mrf.mxu0
    %v996 = vadd.f32 0.0, %v995
    %v997 = vpop.f32.mrf.mxu0
    %v998 = vadd.f32 0.0, %v997
    %999 = vmatmul.bf16.gmra.mxu0 %v312
    %v1000 = vpop.f32.mrf.mxu0
    %v1001 = vadd.f32 0.0, %v1000
    %v1002 = vpop.f32.mrf.mxu0
    %v1003 = vadd.f32 0.0, %v1002
    %1004 = vmatmul.bf16.gmra.mxu0 %v314
    %v1005 = vpop.f32.mrf.mxu0
    %v1006 = vadd.f32 0.0, %v1005
    %v1007 = vpop.f32.mrf.mxu0
    %v1008 = vadd.f32 0.0, %v1007
    %1009 = vmatmul.bf16.gmra.mxu0 %v316
    %v1010 = vpop.f32.mrf.mxu0
    %v1011 = vadd.f32 0.0, %v1010
    %v1012 = vpop.f32.mrf.mxu0
    %v1013 = vadd.f32 0.0, %v1012
    %1014 = vmatmul.bf16.gmra.mxu0 %v318
    %v1015 = vpop.f32.mrf.mxu0
    %v1016 = vadd.f32 0.0, %v1015
    %v1017 = vpop.f32.mrf.mxu0
    %v1018 = vadd.f32 0.0, %v1017
    %1019 = vmatmul.bf16.gmra.mxu0 %v320
    %v1020 = vpop.f32.mrf.mxu0
    %v1021 = vadd.f32 0.0, %v1020
    %v1022 = vpop.f32.mrf.mxu0
    %v1023 = vadd.f32 0.0, %v1022
    %1024 = vmatmul.bf16.gmra.mxu0 %v322
    %v1025 = vpop.f32.mrf.mxu0
    %v1026 = vadd.f32 0.0, %v1025
    %v1027 = vpop.f32.mrf.mxu0
    %v1028 = vadd.f32 0.0, %v1027
    %1029 = vmatmul.bf16.gmra.mxu0 %v324
    %v1030 = vpop.f32.mrf.mxu0
    %v1031 = vadd.f32 0.0, %v1030
    %v1032 = vpop.f32.mrf.mxu0
    %v1033 = vadd.f32 0.0, %v1032
    %1034 = vdwg.mxu0
    %1035 = vmatpush.bf16.msra.mxu0 %v952
    %1036 = vmatpush.bf16.msra.mxu0 %v950
    %1037 = vmatpush.bf16.msra.mxu0 %v948
    %1038 = vmatpush.bf16.msra.mxu0 %v946
    %1039 = vmatpush.bf16.msra.mxu0 %v944
    %1040 = vmatpush.bf16.msra.mxu0 %v942
    %1041 = vmatpush.bf16.msra.mxu0 %v940
    %1042 = vmatpush.bf16.msra.mxu0 %v938
    %1043 = vmatmul.bf16.gmra.mxu0 %v311
    %v1044 = vpop.f32.mrf.mxu0
    %v1045 = vadd.f32 %v996, %v1044
    %v1046 = vpop.f32.mrf.mxu0
    %v1047 = vadd.f32 %v998, %v1046
    %1048 = vmatmul.bf16.gmra.mxu0 %v313
    %v1049 = vpop.f32.mrf.mxu0
    %v1050 = vadd.f32 %v1001, %v1049
    %v1051 = vpop.f32.mrf.mxu0
    %v1052 = vadd.f32 %v1003, %v1051
    %1053 = vmatmul.bf16.gmra.mxu0 %v315
    %v1054 = vpop.f32.mrf.mxu0
    %v1055 = vadd.f32 %v1006, %v1054
    %v1056 = vpop.f32.mrf.mxu0
    %v1057 = vadd.f32 %v1008, %v1056
    %1058 = vmatmul.bf16.gmra.mxu0 %v317
    %v1059 = vpop.f32.mrf.mxu0
    %v1060 = vadd.f32 %v1011, %v1059
    %v1061 = vpop.f32.mrf.mxu0
    %v1062 = vadd.f32 %v1013, %v1061
    %1063 = vmatmul.bf16.gmra.mxu0 %v319
    %v1064 = vpop.f32.mrf.mxu0
    %v1065 = vadd.f32 %v1016, %v1064
    %v1066 = vpop.f32.mrf.mxu0
    %v1067 = vadd.f32 %v1018, %v1066
    %1068 = vmatmul.bf16.gmra.mxu0 %v321
    %v1069 = vpop.f32.mrf.mxu0
    %v1070 = vadd.f32 %v1021, %v1069
    %v1071 = vpop.f32.mrf.mxu0
    %v1072 = vadd.f32 %v1023, %v1071
    %1073 = vmatmul.bf16.gmra.mxu0 %v323
    %v1074 = vpop.f32.mrf.mxu0
    %v1075 = vadd.f32 %v1026, %v1074
    %v1076 = vpop.f32.mrf.mxu0
    %v1077 = vadd.f32 %v1028, %v1076
    %1078 = vmatmul.bf16.gmra.mxu0 %v325
    %v1079 = vpop.f32.mrf.mxu0
    %v1080 = vadd.f32 %v1031, %v1079
    %v1081 = vpop.f32.mrf.mxu0
    %v1082 = vadd.f32 %v1033, %v1081
    %1083 = vdwg.mxu0
    %1084 = vmatpush.bf16.msra.mxu0 %v937
    %1085 = vmatpush.bf16.msra.mxu0 %v935
    %1086 = vmatpush.bf16.msra.mxu0 %v933
    %1087 = vmatpush.bf16.msra.mxu0 %v931
    %1088 = vmatpush.bf16.msra.mxu0 %v929
    %1089 = vmatpush.bf16.msra.mxu0 %v927
    %1090 = vmatpush.bf16.msra.mxu0 %v925
    %1091 = vmatpush.bf16.msra.mxu0 %v923
    %1092 = vmatmul.bf16.gmra.mxu0 %v310
    %v1093 = vpop.f32.mrf.mxu0
    %v1094 = vadd.f32 0.0, %v1093
    %v1095 = vpop.f32.mrf.mxu0
    %v1096 = vadd.f32 0.0, %v1095
    %1097 = vmatmul.bf16.gmra.mxu0 %v312
    %v1098 = vpop.f32.mrf.mxu0
    %v1099 = vadd.f32 0.0, %v1098
    %v1100 = vpop.f32.mrf.mxu0
    %v1101 = vadd.f32 0.0, %v1100
    %1102 = vmatmul.bf16.gmra.mxu0 %v314
    %v1103 = vpop.f32.mrf.mxu0
    %v1104 = vadd.f32 0.0, %v1103
    %v1105 = vpop.f32.mrf.mxu0
    %v1106 = vadd.f32 0.0, %v1105
    %1107 = vmatmul.bf16.gmra.mxu0 %v316
    %v1108 = vpop.f32.mrf.mxu0
    %v1109 = vadd.f32 0.0, %v1108
    %v1110 = vpop.f32.mrf.mxu0
    %v1111 = vadd.f32 0.0, %v1110
    %1112 = vmatmul.bf16.gmra.mxu0 %v318
    %v1113 = vpop.f32.mrf.mxu0
    %v1114 = vadd.f32 0.0, %v1113
    %v1115 = vpop.f32.mrf.mxu0
    %v1116 = vadd.f32 0.0, %v1115
    %1117 = vmatmul.bf16.gmra.mxu0 %v320
    %v1118 = vpop.f32.mrf.mxu0
    %v1119 = vadd.f32 0.0, %v1118
    %v1120 = vpop.f32.mrf.mxu0
    %v1121 = vadd.f32 0.0, %v1120
    %1122 = vmatmul.bf16.gmra.mxu0 %v322
    %v1123 = vpop.f32.mrf.mxu0
    %v1124 = vadd.f32 0.0, %v1123
    %v1125 = vpop.f32.mrf.mxu0
    %v1126 = vadd.f32 0.0, %v1125
    %1127 = vmatmul.bf16.gmra.mxu0 %v324
    %v1128 = vpop.f32.mrf.mxu0
    %v1129 = vadd.f32 0.0, %v1128
    %v1130 = vpop.f32.mrf.mxu0
    %v1131 = vadd.f32 0.0, %v1130
    %1132 = vdwg.mxu0
    %1133 = vmatpush.bf16.msra.mxu0 %v953
    %1134 = vmatpush.bf16.msra.mxu0 %v951
    %1135 = vmatpush.bf16.msra.mxu0 %v949
    %1136 = vmatpush.bf16.msra.mxu0 %v947
    %1137 = vmatpush.bf16.msra.mxu0 %v945
    %1138 = vmatpush.bf16.msra.mxu0 %v943
    %1139 = vmatpush.bf16.msra.mxu0 %v941
    %1140 = vmatpush.bf16.msra.mxu0 %v939
    %1141 = vmatmul.bf16.gmra.mxu0 %v311
    %v1142 = vpop.f32.mrf.mxu0
    %v1143 = vadd.f32 %v1094, %v1142
    %v1144 = vpop.f32.mrf.mxu0
    %v1145 = vadd.f32 %v1096, %v1144
    %1146 = vmatmul.bf16.gmra.mxu0 %v313
    %v1147 = vpop.f32.mrf.mxu0
    %v1148 = vadd.f32 %v1099, %v1147
    %v1149 = vpop.f32.mrf.mxu0
    %v1150 = vadd.f32 %v1101, %v1149
    %1151 = vmatmul.bf16.gmra.mxu0 %v315
    %v1152 = vpop.f32.mrf.mxu0
    %v1153 = vadd.f32 %v1104, %v1152
    %v1154 = vpop.f32.mrf.mxu0
    %v1155 = vadd.f32 %v1106, %v1154
    %1156 = vmatmul.bf16.gmra.mxu0 %v317
    %v1157 = vpop.f32.mrf.mxu0
    %v1158 = vadd.f32 %v1109, %v1157
    %v1159 = vpop.f32.mrf.mxu0
    %v1160 = vadd.f32 %v1111, %v1159
    %1161 = vmatmul.bf16.gmra.mxu0 %v319
    %v1162 = vpop.f32.mrf.mxu0
    %v1163 = vadd.f32 %v1114, %v1162
    %v1164 = vpop.f32.mrf.mxu0
    %v1165 = vadd.f32 %v1116, %v1164
    %1166 = vmatmul.bf16.gmra.mxu0 %v321
    %v1167 = vpop.f32.mrf.mxu0
    %v1168 = vadd.f32 %v1119, %v1167
    %v1169 = vpop.f32.mrf.mxu0
    %v1170 = vadd.f32 %v1121, %v1169
    %1171 = vmatmul.bf16.gmra.mxu0 %v323
    %v1172 = vpop.f32.mrf.mxu0
    %v1173 = vadd.f32 %v1124, %v1172
    %v1174 = vpop.f32.mrf.mxu0
    %v1175 = vadd.f32 %v1126, %v1174
    %1176 = vmatmul.bf16.gmra.mxu0 %v325
    %v1177 = vpop.f32.mrf.mxu0
    %v1178 = vadd.f32 %v1129, %v1177
    %v1179 = vpop.f32.mrf.mxu0
    %v1180 = vadd.f32 %v1131, %v1179
    %1181 = vdwg.mxu0
    %v1214 = vunpack.c.l.b16 %v438
    %v1215 = vunpack.c.h.b16 %v438
    %v1216 = vunpack.c.l.b16 %v439
    %v1217 = vunpack.c.h.b16 %v439
    %v1218 = vunpack.c.l.b16 %v440
    %v1219 = vunpack.c.h.b16 %v440
    %v1220 = vunpack.c.l.b16 %v441
    %v1221 = vunpack.c.h.b16 %v441
    %v1222 = vunpack.c.l.b16 %v442
    %v1223 = vunpack.c.h.b16 %v442
    %v1224 = vunpack.c.l.b16 %v443
    %v1225 = vunpack.c.h.b16 %v443
    %v1226 = vunpack.c.l.b16 %v444
    %v1227 = vunpack.c.h.b16 %v444
    %v1228 = vunpack.c.l.b16 %v445
    %v1229 = vunpack.c.h.b16 %v445
    %v1230 = vunpack.c.l.b16 %v446
    %v1231 = vunpack.c.h.b16 %v446
    %v1232 = vunpack.c.l.b16 %v447
    %v1233 = vunpack.c.h.b16 %v447
    %v1234 = vunpack.c.l.b16 %v448
    %v1235 = vunpack.c.h.b16 %v448
    %v1236 = vunpack.c.l.b16 %v449
    %v1237 = vunpack.c.h.b16 %v449
    %v1238 = vunpack.c.l.b16 %v450
    %v1239 = vunpack.c.h.b16 %v450
    %v1240 = vunpack.c.l.b16 %v451
    %v1241 = vunpack.c.h.b16 %v451
    %v1242 = vunpack.c.l.b16 %v452
    %v1243 = vunpack.c.h.b16 %v452
    %v1244 = vunpack.c.l.b16 %v453
    %v1245 = vunpack.c.h.b16 %v453
    %v1246 = vunpack.c.l.b16 %v454
    %v1247 = vunpack.c.h.b16 %v454
    %v1248 = vunpack.c.l.b16 %v455
    %v1249 = vunpack.c.h.b16 %v455
    %v1250 = vunpack.c.l.b16 %v456
    %v1251 = vunpack.c.h.b16 %v456
    %v1252 = vunpack.c.l.b16 %v457
    %v1253 = vunpack.c.h.b16 %v457
    %v1254 = vunpack.c.l.b16 %v458
    %v1255 = vunpack.c.h.b16 %v458
    %v1256 = vunpack.c.l.b16 %v459
    %v1257 = vunpack.c.h.b16 %v459
    %v1258 = vunpack.c.l.b16 %v460
    %v1259 = vunpack.c.h.b16 %v460
    %v1260 = vunpack.c.l.b16 %v461
    %v1261 = vunpack.c.h.b16 %v461
    %v1262 = vunpack.c.l.b16 %v462
    %v1263 = vunpack.c.h.b16 %v462
    %v1264 = vunpack.c.l.b16 %v463
    %v1265 = vunpack.c.h.b16 %v463
    %v1266 = vunpack.c.l.b16 %v464
    %v1267 = vunpack.c.h.b16 %v464
    %v1268 = vunpack.c.l.b16 %v465
    %v1269 = vunpack.c.h.b16 %v465
    %v1270 = vunpack.c.l.b16 %v466
    %v1271 = vunpack.c.h.b16 %v466
    %v1272 = vunpack.c.l.b16 %v467
    %v1273 = vunpack.c.h.b16 %v467
    %v1274 = vunpack.c.l.b16 %v468
    %v1275 = vunpack.c.h.b16 %v468
    %v1276 = vunpack.c.l.b16 %v469
    %v1277 = vunpack.c.h.b16 %v469
    %v1278 = vpack.c.b16 %v1216, %v1214
    %v1279 = vpack.c.b16 %v1217, %v1215
    %v1280 = vpack.c.b16 %v1220, %v1218
    %v1281 = vpack.c.b16 %v1221, %v1219
    %v1282 = vpack.c.b16 %v1224, %v1222
    %v1283 = vpack.c.b16 %v1225, %v1223
    %v1284 = vpack.c.b16 %v1228, %v1226
    %v1285 = vpack.c.b16 %v1229, %v1227
    %v1286 = vpack.c.b16 %v1232, %v1230
    %v1287 = vpack.c.b16 %v1233, %v1231
    %v1288 = vpack.c.b16 %v1236, %v1234
    %v1289 = vpack.c.b16 %v1237, %v1235
    %v1290 = vpack.c.b16 %v1240, %v1238
    %v1291 = vpack.c.b16 %v1241, %v1239
    %v1292 = vpack.c.b16 %v1244, %v1242
    %v1293 = vpack.c.b16 %v1245, %v1243
    %v1294 = vpack.c.b16 %v1248, %v1246
    %v1295 = vpack.c.b16 %v1249, %v1247
    %v1296 = vpack.c.b16 %v1252, %v1250
    %v1297 = vpack.c.b16 %v1253, %v1251
    %v1298 = vpack.c.b16 %v1256, %v1254
    %v1299 = vpack.c.b16 %v1257, %v1255
    %v1300 = vpack.c.b16 %v1260, %v1258
    %v1301 = vpack.c.b16 %v1261, %v1259
    %v1302 = vpack.c.b16 %v1264, %v1262
    %v1303 = vpack.c.b16 %v1265, %v1263
    %v1304 = vpack.c.b16 %v1268, %v1266
    %v1305 = vpack.c.b16 %v1269, %v1267
    %v1306 = vpack.c.b16 %v1272, %v1270
    %v1307 = vpack.c.b16 %v1273, %v1271
    %v1308 = vpack.c.b16 %v1276, %v1274
    %v1309 = vpack.c.b16 %v1277, %v1275
    %1342 = vmatpush.bf16.msra.mxu0 %v1292
    %1343 = vmatpush.bf16.msra.mxu0 %v1290
    %1344 = vmatpush.bf16.msra.mxu0 %v1288
    %1345 = vmatpush.bf16.msra.mxu0 %v1286
    %1346 = vmatpush.bf16.msra.mxu0 %v1284
    %1347 = vmatpush.bf16.msra.mxu0 %v1282
    %1348 = vmatpush.bf16.msra.mxu0 %v1280
    %1349 = vmatpush.bf16.msra.mxu0 %v1278
    %1350 = vmatmul.bf16.gmra.mxu0 %v358
    %v1351 = vpop.f32.mrf.mxu0
    %v1352 = vadd.f32 0.0, %v1351
    %v1353 = vpop.f32.mrf.mxu0
    %v1354 = vadd.f32 0.0, %v1353
    %1355 = vmatmul.bf16.gmra.mxu0 %v360
    %v1356 = vpop.f32.mrf.mxu0
    %v1357 = vadd.f32 0.0, %v1356
    %v1358 = vpop.f32.mrf.mxu0
    %v1359 = vadd.f32 0.0, %v1358
    %1360 = vmatmul.bf16.gmra.mxu0 %v362
    %v1361 = vpop.f32.mrf.mxu0
    %v1362 = vadd.f32 0.0, %v1361
    %v1363 = vpop.f32.mrf.mxu0
    %v1364 = vadd.f32 0.0, %v1363
    %1365 = vmatmul.bf16.gmra.mxu0 %v364
    %v1366 = vpop.f32.mrf.mxu0
    %v1367 = vadd.f32 0.0, %v1366
    %v1368 = vpop.f32.mrf.mxu0
    %v1369 = vadd.f32 0.0, %v1368
    %1370 = vmatmul.bf16.gmra.mxu0 %v366
    %v1371 = vpop.f32.mrf.mxu0
    %v1372 = vadd.f32 0.0, %v1371
    %v1373 = vpop.f32.mrf.mxu0
    %v1374 = vadd.f32 0.0, %v1373
    %1375 = vmatmul.bf16.gmra.mxu0 %v368
    %v1376 = vpop.f32.mrf.mxu0
    %v1377 = vadd.f32 0.0, %v1376
    %v1378 = vpop.f32.mrf.mxu0
    %v1379 = vadd.f32 0.0, %v1378
    %1380 = vmatmul.bf16.gmra.mxu0 %v370
    %v1381 = vpop.f32.mrf.mxu0
    %v1382 = vadd.f32 0.0, %v1381
    %v1383 = vpop.f32.mrf.mxu0
    %v1384 = vadd.f32 0.0, %v1383
    %1385 = vmatmul.bf16.gmra.mxu0 %v372
    %v1386 = vpop.f32.mrf.mxu0
    %v1387 = vadd.f32 0.0, %v1386
    %v1388 = vpop.f32.mrf.mxu0
    %v1389 = vadd.f32 0.0, %v1388
    %1390 = vdwg.mxu0
    %1391 = vmatpush.bf16.msra.mxu0 %v1308
    %1392 = vmatpush.bf16.msra.mxu0 %v1306
    %1393 = vmatpush.bf16.msra.mxu0 %v1304
    %1394 = vmatpush.bf16.msra.mxu0 %v1302
    %1395 = vmatpush.bf16.msra.mxu0 %v1300
    %1396 = vmatpush.bf16.msra.mxu0 %v1298
    %1397 = vmatpush.bf16.msra.mxu0 %v1296
    %1398 = vmatpush.bf16.msra.mxu0 %v1294
    %1399 = vmatmul.bf16.gmra.mxu0 %v359
    %v1400 = vpop.f32.mrf.mxu0
    %v1401 = vadd.f32 %v1352, %v1400
    %v1402 = vpop.f32.mrf.mxu0
    %v1403 = vadd.f32 %v1354, %v1402
    %1404 = vmatmul.bf16.gmra.mxu0 %v361
    %v1405 = vpop.f32.mrf.mxu0
    %v1406 = vadd.f32 %v1357, %v1405
    %v1407 = vpop.f32.mrf.mxu0
    %v1408 = vadd.f32 %v1359, %v1407
    %1409 = vmatmul.bf16.gmra.mxu0 %v363
    %v1410 = vpop.f32.mrf.mxu0
    %v1411 = vadd.f32 %v1362, %v1410
    %v1412 = vpop.f32.mrf.mxu0
    %v1413 = vadd.f32 %v1364, %v1412
    %1414 = vmatmul.bf16.gmra.mxu0 %v365
    %v1415 = vpop.f32.mrf.mxu0
    %v1416 = vadd.f32 %v1367, %v1415
    %v1417 = vpop.f32.mrf.mxu0
    %v1418 = vadd.f32 %v1369, %v1417
    %1419 = vmatmul.bf16.gmra.mxu0 %v367
    %v1420 = vpop.f32.mrf.mxu0
    %v1421 = vadd.f32 %v1372, %v1420
    %v1422 = vpop.f32.mrf.mxu0
    %v1423 = vadd.f32 %v1374, %v1422
    %1424 = vmatmul.bf16.gmra.mxu0 %v369
    %v1425 = vpop.f32.mrf.mxu0
    %v1426 = vadd.f32 %v1377, %v1425
    %v1427 = vpop.f32.mrf.mxu0
    %v1428 = vadd.f32 %v1379, %v1427
    %1429 = vmatmul.bf16.gmra.mxu0 %v371
    %v1430 = vpop.f32.mrf.mxu0
    %v1431 = vadd.f32 %v1382, %v1430
    %v1432 = vpop.f32.mrf.mxu0
    %v1433 = vadd.f32 %v1384, %v1432
    %1434 = vmatmul.bf16.gmra.mxu0 %v373
    %v1435 = vpop.f32.mrf.mxu0
    %v1436 = vadd.f32 %v1387, %v1435
    %v1437 = vpop.f32.mrf.mxu0
    %v1438 = vadd.f32 %v1389, %v1437
    %1439 = vdwg.mxu0
    %1440 = vmatpush.bf16.msra.mxu0 %v1293
    %1441 = vmatpush.bf16.msra.mxu0 %v1291
    %1442 = vmatpush.bf16.msra.mxu0 %v1289
    %1443 = vmatpush.bf16.msra.mxu0 %v1287
    %1444 = vmatpush.bf16.msra.mxu0 %v1285
    %1445 = vmatpush.bf16.msra.mxu0 %v1283
    %1446 = vmatpush.bf16.msra.mxu0 %v1281
    %1447 = vmatpush.bf16.msra.mxu0 %v1279
    %1448 = vmatmul.bf16.gmra.mxu0 %v358
    %v1449 = vpop.f32.mrf.mxu0
    %v1450 = vadd.f32 0.0, %v1449
    %v1451 = vpop.f32.mrf.mxu0
    %v1452 = vadd.f32 0.0, %v1451
    %1453 = vmatmul.bf16.gmra.mxu0 %v360
    %v1454 = vpop.f32.mrf.mxu0
    %v1455 = vadd.f32 0.0, %v1454
    %v1456 = vpop.f32.mrf.mxu0
    %v1457 = vadd.f32 0.0, %v1456
    %1458 = vmatmul.bf16.gmra.mxu0 %v362
    %v1459 = vpop.f32.mrf.mxu0
    %v1460 = vadd.f32 0.0, %v1459
    %v1461 = vpop.f32.mrf.mxu0
    %v1462 = vadd.f32 0.0, %v1461
    %1463 = vmatmul.bf16.gmra.mxu0 %v364
    %v1464 = vpop.f32.mrf.mxu0
    %v1465 = vadd.f32 0.0, %v1464
    %v1466 = vpop.f32.mrf.mxu0
    %v1467 = vadd.f32 0.0, %v1466
    %1468 = vmatmul.bf16.gmra.mxu0 %v366
    %v1469 = vpop.f32.mrf.mxu0
    %v1470 = vadd.f32 0.0, %v1469
    %v1471 = vpop.f32.mrf.mxu0
    %v1472 = vadd.f32 0.0, %v1471
    %1473 = vmatmul.bf16.gmra.mxu0 %v368
    %v1474 = vpop.f32.mrf.mxu0
    %v1475 = vadd.f32 0.0, %v1474
    %v1476 = vpop.f32.mrf.mxu0
    %v1477 = vadd.f32 0.0, %v1476
    %1478 = vmatmul.bf16.gmra.mxu0 %v370
    %v1479 = vpop.f32.mrf.mxu0
    %v1480 = vadd.f32 0.0, %v1479
    %v1481 = vpop.f32.mrf.mxu0
    %v1482 = vadd.f32 0.0, %v1481
    %1483 = vmatmul.bf16.gmra.mxu0 %v372
    %v1484 = vpop.f32.mrf.mxu0
    %v1485 = vadd.f32 0.0, %v1484
    %v1486 = vpop.f32.mrf.mxu0
    %v1487 = vadd.f32 0.0, %v1486
    %1488 = vdwg.mxu0
    %1489 = vmatpush.bf16.msra.mxu0 %v1309
    %1490 = vmatpush.bf16.msra.mxu0 %v1307
    %1491 = vmatpush.bf16.msra.mxu0 %v1305
    %1492 = vmatpush.bf16.msra.mxu0 %v1303
    %1493 = vmatpush.bf16.msra.mxu0 %v1301
    %1494 = vmatpush.bf16.msra.mxu0 %v1299
    %1495 = vmatpush.bf16.msra.mxu0 %v1297
    %1496 = vmatpush.bf16.msra.mxu0 %v1295
    %1497 = vmatmul.bf16.gmra.mxu0 %v359
    %v1498 = vpop.f32.mrf.mxu0
    %v1499 = vadd.f32 %v1450, %v1498
    %v1500 = vpop.f32.mrf.mxu0
    %v1501 = vadd.f32 %v1452, %v1500
    %1502 = vmatmul.bf16.gmra.mxu0 %v361
    %v1503 = vpop.f32.mrf.mxu0
    %v1504 = vadd.f32 %v1455, %v1503
    %v1505 = vpop.f32.mrf.mxu0
    %v1506 = vadd.f32 %v1457, %v1505
    %1507 = vmatmul.bf16.gmra.mxu0 %v363
    %v1508 = vpop.f32.mrf.mxu0
    %v1509 = vadd.f32 %v1460, %v1508
    %v1510 = vpop.f32.mrf.mxu0
    %v1511 = vadd.f32 %v1462, %v1510
    %1512 = vmatmul.bf16.gmra.mxu0 %v365
    %v1513 = vpop.f32.mrf.mxu0
    %v1514 = vadd.f32 %v1465, %v1513
    %v1515 = vpop.f32.mrf.mxu0
    %v1516 = vadd.f32 %v1467, %v1515
    %1517 = vmatmul.bf16.gmra.mxu0 %v367
    %v1518 = vpop.f32.mrf.mxu0
    %v1519 = vadd.f32 %v1470, %v1518
    %v1520 = vpop.f32.mrf.mxu0
    %v1521 = vadd.f32 %v1472, %v1520
    %1522 = vmatmul.bf16.gmra.mxu0 %v369
    %v1523 = vpop.f32.mrf.mxu0
    %v1524 = vadd.f32 %v1475, %v1523
    %v1525 = vpop.f32.mrf.mxu0
    %v1526 = vadd.f32 %v1477, %v1525
    %1527 = vmatmul.bf16.gmra.mxu0 %v371
    %v1528 = vpop.f32.mrf.mxu0
    %v1529 = vadd.f32 %v1480, %v1528
    %v1530 = vpop.f32.mrf.mxu0
    %v1531 = vadd.f32 %v1482, %v1530
    %1532 = vmatmul.bf16.gmra.mxu0 %v373
    %v1533 = vpop.f32.mrf.mxu0
    %v1534 = vadd.f32 %v1485, %v1533
    %v1535 = vpop.f32.mrf.mxu0
    %v1536 = vadd.f32 %v1487, %v1535
    %1537 = vdwg.mxu0
    %v1538 = vsub.f32 %v689, %v1045
    %v1539 = vsub.f32 %v787, %v1143
    %v1540 = vsub.f32 %v691, %v1047
    %v1541 = vsub.f32 %v789, %v1145
    %v1542 = vsub.f32 %v694, %v1050
    %v1543 = vsub.f32 %v792, %v1148
    %v1544 = vsub.f32 %v696, %v1052
    %v1545 = vsub.f32 %v794, %v1150
    %v1546 = vsub.f32 %v699, %v1055
    %v1547 = vsub.f32 %v797, %v1153
    %v1548 = vsub.f32 %v701, %v1057
    %v1549 = vsub.f32 %v799, %v1155
    %v1550 = vsub.f32 %v704, %v1060
    %v1551 = vsub.f32 %v802, %v1158
    %v1552 = vsub.f32 %v706, %v1062
    %v1553 = vsub.f32 %v804, %v1160
    %v1554 = vsub.f32 %v709, %v1065
    %v1555 = vsub.f32 %v807, %v1163
    %v1556 = vsub.f32 %v711, %v1067
    %v1557 = vsub.f32 %v809, %v1165
    %v1558 = vsub.f32 %v714, %v1070
    %v1559 = vsub.f32 %v812, %v1168
    %v1560 = vsub.f32 %v716, %v1072
    %v1561 = vsub.f32 %v814, %v1170
    %v1562 = vsub.f32 %v719, %v1075
    %v1563 = vsub.f32 %v817, %v1173
    %v1564 = vsub.f32 %v721, %v1077
    %v1565 = vsub.f32 %v819, %v1175
    %v1566 = vsub.f32 %v724, %v1080
    %v1567 = vsub.f32 %v822, %v1178
    %v1568 = vsub.f32 %v726, %v1082
    %v1569 = vsub.f32 %v824, %v1180
    %v1570 = vsub.f32 %v1401, %v689
    %v1571 = vsub.f32 %v1499, %v787
    %v1572 = vsub.f32 %v1403, %v691
    %v1573 = vsub.f32 %v1501, %v789
    %v1574 = vsub.f32 %v1406, %v694
    %v1575 = vsub.f32 %v1504, %v792
    %v1576 = vsub.f32 %v1408, %v696
    %v1577 = vsub.f32 %v1506, %v794
    %v1578 = vsub.f32 %v1411, %v699
    %v1579 = vsub.f32 %v1509, %v797
    %v1580 = vsub.f32 %v1413, %v701
    %v1581 = vsub.f32 %v1511, %v799
    %v1582 = vsub.f32 %v1416, %v704
    %v1583 = vsub.f32 %v1514, %v802
    %v1584 = vsub.f32 %v1418, %v706
    %v1585 = vsub.f32 %v1516, %v804
    %v1586 = vsub.f32 %v1421, %v709
    %v1587 = vsub.f32 %v1519, %v807
    %v1588 = vsub.f32 %v1423, %v711
    %v1589 = vsub.f32 %v1521, %v809
    %v1590 = vsub.f32 %v1426, %v714
    %v1591 = vsub.f32 %v1524, %v812
    %v1592 = vsub.f32 %v1428, %v716
    %v1593 = vsub.f32 %v1526, %v814
    %v1594 = vsub.f32 %v1431, %v719
    %v1595 = vsub.f32 %v1529, %v817
    %v1596 = vsub.f32 %v1433, %v721
    %v1597 = vsub.f32 %v1531, %v819
    %v1598 = vsub.f32 %v1436, %v724
    %v1599 = vsub.f32 %v1534, %v822
    %v1600 = vsub.f32 %v1438, %v726
    %v1601 = vsub.f32 %v1536, %v824
    %v1602 = vsub.f32 %v1570, %v1045
    %v1603 = vsub.f32 %v1571, %v1143
    %v1604 = vsub.f32 %v1572, %v1047
    %v1605 = vsub.f32 %v1573, %v1145
    %v1606 = vsub.f32 %v1574, %v1050
    %v1607 = vsub.f32 %v1575, %v1148
    %v1608 = vsub.f32 %v1576, %v1052
    %v1609 = vsub.f32 %v1577, %v1150
    %v1610 = vsub.f32 %v1578, %v1055
    %v1611 = vsub.f32 %v1579, %v1153
    %v1612 = vsub.f32 %v1580, %v1057
    %v1613 = vsub.f32 %v1581, %v1155
    %v1614 = vsub.f32 %v1582, %v1060
    %v1615 = vsub.f32 %v1583, %v1158
    %v1616 = vsub.f32 %v1584, %v1062
    %v1617 = vsub.f32 %v1585, %v1160
    %v1618 = vsub.f32 %v1586, %v1065
    %v1619 = vsub.f32 %v1587, %v1163
    %v1620 = vsub.f32 %v1588, %v1067
    %v1621 = vsub.f32 %v1589, %v1165
    %v1622 = vsub.f32 %v1590, %v1070
    %v1623 = vsub.f32 %v1591, %v1168
    %v1624 = vsub.f32 %v1592, %v1072
    %v1625 = vsub.f32 %v1593, %v1170
    %v1626 = vsub.f32 %v1594, %v1075
    %v1627 = vsub.f32 %v1595, %v1173
    %v1628 = vsub.f32 %v1596, %v1077
    %v1629 = vsub.f32 %v1597, %v1175
    %v1630 = vsub.f32 %v1598, %v1080
    %v1631 = vsub.f32 %v1599, %v1178
    %v1632 = vsub.f32 %v1600, %v1082
    %v1633 = vsub.f32 %v1601, %v1180
    %v1634 = vmul.f32 %v1538, %v1538
    %v1635 = vmul.f32 %v1539, %v1539
    %v1636 = vmul.f32 %v1540, %v1540
    %v1637 = vmul.f32 %v1541, %v1541
    %v1638 = vmul.f32 %v1542, %v1542
    %v1639 = vmul.f32 %v1543, %v1543
    %v1640 = vmul.f32 %v1544, %v1544
    %v1641 = vmul.f32 %v1545, %v1545
    %v1642 = vmul.f32 %v1546, %v1546
    %v1643 = vmul.f32 %v1547, %v1547
    %v1644 = vmul.f32 %v1548, %v1548
    %v1645 = vmul.f32 %v1549, %v1549
    %v1646 = vmul.f32 %v1550, %v1550
    %v1647 = vmul.f32 %v1551, %v1551
    %v1648 = vmul.f32 %v1552, %v1552
    %v1649 = vmul.f32 %v1553, %v1553
    %v1650 = vmul.f32 %v1554, %v1554
    %v1651 = vmul.f32 %v1555, %v1555
    %v1652 = vmul.f32 %v1556, %v1556
    %v1653 = vmul.f32 %v1557, %v1557
    %v1654 = vmul.f32 %v1558, %v1558
    %v1655 = vmul.f32 %v1559, %v1559
    %v1656 = vmul.f32 %v1560, %v1560
    %v1657 = vmul.f32 %v1561, %v1561
    %v1658 = vmul.f32 %v1562, %v1562
    %v1659 = vmul.f32 %v1563, %v1563
    %v1660 = vmul.f32 %v1564, %v1564
    %v1661 = vmul.f32 %v1565, %v1565
    %v1662 = vmul.f32 %v1566, %v1566
    %v1663 = vmul.f32 %v1567, %v1567
    %v1664 = vmul.f32 %v1568, %v1568
    %v1665 = vmul.f32 %v1569, %v1569
    %v1666 = vmul.f32 %v1602, %v1602
    %v1667 = vmul.f32 %v1603, %v1603
    %v1668 = vmul.f32 %v1604, %v1604
    %v1669 = vmul.f32 %v1605, %v1605
    %v1670 = vmul.f32 %v1606, %v1606
    %v1671 = vmul.f32 %v1607, %v1607
    %v1672 = vmul.f32 %v1608, %v1608
    %v1673 = vmul.f32 %v1609, %v1609
    %v1674 = vmul.f32 %v1610, %v1610
    %v1675 = vmul.f32 %v1611, %v1611
    %v1676 = vmul.f32 %v1612, %v1612
    %v1677 = vmul.f32 %v1613, %v1613
    %v1678 = vmul.f32 %v1614, %v1614
    %v1679 = vmul.f32 %v1615, %v1615
    %v1680 = vmul.f32 %v1616, %v1616
    %v1681 = vmul.f32 %v1617, %v1617
    %v1682 = vmul.f32 %v1618, %v1618
    %v1683 = vmul.f32 %v1619, %v1619
    %v1684 = vmul.f32 %v1620, %v1620
    %v1685 = vmul.f32 %v1621, %v1621
    %v1686 = vmul.f32 %v1622, %v1622
    %v1687 = vmul.f32 %v1623, %v1623
    %v1688 = vmul.f32 %v1624, %v1624
    %v1689 = vmul.f32 %v1625, %v1625
    %v1690 = vmul.f32 %v1626, %v1626
    %v1691 = vmul.f32 %v1627, %v1627
    %v1692 = vmul.f32 %v1628, %v1628
    %v1693 = vmul.f32 %v1629, %v1629
    %v1694 = vmul.f32 %v1630, %v1630
    %v1695 = vmul.f32 %v1631, %v1631
    %v1696 = vmul.f32 %v1632, %v1632
    %v1697 = vmul.f32 %v1633, %v1633
    %v1698 = vadd.f32 %v1634, %v1666
    %v1699 = vadd.f32 %v1635, %v1667
    %v1700 = vadd.f32 %v1636, %v1668
    %v1701 = vadd.f32 %v1637, %v1669
    %v1702 = vadd.f32 %v1638, %v1670
    %v1703 = vadd.f32 %v1639, %v1671
    %v1704 = vadd.f32 %v1640, %v1672
    %v1705 = vadd.f32 %v1641, %v1673
    %v1706 = vadd.f32 %v1642, %v1674
    %v1707 = vadd.f32 %v1643, %v1675
    %v1708 = vadd.f32 %v1644, %v1676
    %v1709 = vadd.f32 %v1645, %v1677
    %v1710 = vadd.f32 %v1646, %v1678
    %v1711 = vadd.f32 %v1647, %v1679
    %v1712 = vadd.f32 %v1648, %v1680
    %v1713 = vadd.f32 %v1649, %v1681
    %v1714 = vadd.f32 %v1650, %v1682
    %v1715 = vadd.f32 %v1651, %v1683
    %v1716 = vadd.f32 %v1652, %v1684
    %v1717 = vadd.f32 %v1653, %v1685
    %v1718 = vadd.f32 %v1654, %v1686
    %v1719 = vadd.f32 %v1655, %v1687
    %v1720 = vadd.f32 %v1656, %v1688
    %v1721 = vadd.f32 %v1657, %v1689
    %v1722 = vadd.f32 %v1658, %v1690
    %v1723 = vadd.f32 %v1659, %v1691
    %v1724 = vadd.f32 %v1660, %v1692
    %v1725 = vadd.f32 %v1661, %v1693
    %v1726 = vadd.f32 %v1662, %v1694
    %v1727 = vadd.f32 %v1663, %v1695
    %v1728 = vadd.f32 %v1664, %v1696
    %v1729 = vadd.f32 %v1665, %v1697
    %v1730 = vrsqrt.pop %v1698
    %v1731 = vmul.f32 %v1730, %v1698
    %v1732 = vmul.f32 %v1731, %v1730
    %v1733 = vmul.f32 0.5, %v1732
    %v1734 = vsub.f32 1.5, %v1733
    %v1735 = vmul.f32 %v1730, %v1734
    %v1736 = vmul.f32 %v1698, %v1735
    %vm1737 = vcmp.eq.f32.partialorder %v1698, inf
    %v1738 = vsel %vm1737, %v1698, %v1736
    %vm1739 = vcmp.eq.f32.partialorder %v1698, 0.0
    %v1740 = vand.u32 %v1698, 2147483648
    %v1741 = vsel %vm1739, %v1740, %v1738
    %v1742 = vrsqrt.pop %v1699
    %v1743 = vmul.f32 %v1742, %v1699
    %v1744 = vmul.f32 %v1743, %v1742
    %v1745 = vmul.f32 0.5, %v1744
    %v1746 = vsub.f32 1.5, %v1745
    %v1747 = vmul.f32 %v1742, %v1746
    %v1748 = vmul.f32 %v1699, %v1747
    %vm1749 = vcmp.eq.f32.partialorder %v1699, inf
    %v1750 = vsel %vm1749, %v1699, %v1748
    %vm1751 = vcmp.eq.f32.partialorder %v1699, 0.0
    %v1752 = vand.u32 %v1699, 2147483648
    %v1753 = vsel %vm1751, %v1752, %v1750
    %v1754 = vrsqrt.pop %v1700
    %v1755 = vmul.f32 %v1754, %v1700
    %v1756 = vmul.f32 %v1755, %v1754
    %v1757 = vmul.f32 0.5, %v1756
    %v1758 = vsub.f32 1.5, %v1757
    %v1759 = vmul.f32 %v1754, %v1758
    %v1760 = vmul.f32 %v1700, %v1759
    %vm1761 = vcmp.eq.f32.partialorder %v1700, inf
    %v1762 = vsel %vm1761, %v1700, %v1760
    %vm1763 = vcmp.eq.f32.partialorder %v1700, 0.0
    %v1764 = vand.u32 %v1700, 2147483648
    %v1765 = vsel %vm1763, %v1764, %v1762
    %v1766 = vrsqrt.pop %v1701
    %v1767 = vmul.f32 %v1766, %v1701
    %v1768 = vmul.f32 %v1767, %v1766
    %v1769 = vmul.f32 0.5, %v1768
    %v1770 = vsub.f32 1.5, %v1769
    %v1771 = vmul.f32 %v1766, %v1770
    %v1772 = vmul.f32 %v1701, %v1771
    %vm1773 = vcmp.eq.f32.partialorder %v1701, inf
    %v1774 = vsel %vm1773, %v1701, %v1772
    %vm1775 = vcmp.eq.f32.partialorder %v1701, 0.0
    %v1776 = vand.u32 %v1701, 2147483648
    %v1777 = vsel %vm1775, %v1776, %v1774
    %v1778 = vrsqrt.pop %v1702
    %v1779 = vmul.f32 %v1778, %v1702
    %v1780 = vmul.f32 %v1779, %v1778
    %v1781 = vmul.f32 0.5, %v1780
    %v1782 = vsub.f32 1.5, %v1781
    %v1783 = vmul.f32 %v1778, %v1782
    %v1784 = vmul.f32 %v1702, %v1783
    %vm1785 = vcmp.eq.f32.partialorder %v1702, inf
    %v1786 = vsel %vm1785, %v1702, %v1784
    %vm1787 = vcmp.eq.f32.partialorder %v1702, 0.0
    %v1788 = vand.u32 %v1702, 2147483648
    %v1789 = vsel %vm1787, %v1788, %v1786
    %v1790 = vrsqrt.pop %v1703
    %v1791 = vmul.f32 %v1790, %v1703
    %v1792 = vmul.f32 %v1791, %v1790
    %v1793 = vmul.f32 0.5, %v1792
    %v1794 = vsub.f32 1.5, %v1793
    %v1795 = vmul.f32 %v1790, %v1794
    %v1796 = vmul.f32 %v1703, %v1795
    %vm1797 = vcmp.eq.f32.partialorder %v1703, inf
    %v1798 = vsel %vm1797, %v1703, %v1796
    %vm1799 = vcmp.eq.f32.partialorder %v1703, 0.0
    %v1800 = vand.u32 %v1703, 2147483648
    %v1801 = vsel %vm1799, %v1800, %v1798
    %v1802 = vrsqrt.pop %v1704
    %v1803 = vmul.f32 %v1802, %v1704
    %v1804 = vmul.f32 %v1803, %v1802
    %v1805 = vmul.f32 0.5, %v1804
    %v1806 = vsub.f32 1.5, %v1805
    %v1807 = vmul.f32 %v1802, %v1806
    %v1808 = vmul.f32 %v1704, %v1807
    %vm1809 = vcmp.eq.f32.partialorder %v1704, inf
    %v1810 = vsel %vm1809, %v1704, %v1808
    %vm1811 = vcmp.eq.f32.partialorder %v1704, 0.0
    %v1812 = vand.u32 %v1704, 2147483648
    %v1813 = vsel %vm1811, %v1812, %v1810
    %v1814 = vrsqrt.pop %v1705
    %v1815 = vmul.f32 %v1814, %v1705
    %v1816 = vmul.f32 %v1815, %v1814
    %v1817 = vmul.f32 0.5, %v1816
    %v1818 = vsub.f32 1.5, %v1817
    %v1819 = vmul.f32 %v1814, %v1818
    %v1820 = vmul.f32 %v1705, %v1819
    %vm1821 = vcmp.eq.f32.partialorder %v1705, inf
    %v1822 = vsel %vm1821, %v1705, %v1820
    %vm1823 = vcmp.eq.f32.partialorder %v1705, 0.0
    %v1824 = vand.u32 %v1705, 2147483648
    %v1825 = vsel %vm1823, %v1824, %v1822
    %v1826 = vrsqrt.pop %v1706
    %v1827 = vmul.f32 %v1826, %v1706
    %v1828 = vmul.f32 %v1827, %v1826
    %v1829 = vmul.f32 0.5, %v1828
    %v1830 = vsub.f32 1.5, %v1829
    %v1831 = vmul.f32 %v1826, %v1830
    %v1832 = vmul.f32 %v1706, %v1831
    %vm1833 = vcmp.eq.f32.partialorder %v1706, inf
    %v1834 = vsel %vm1833, %v1706, %v1832
    %vm1835 = vcmp.eq.f32.partialorder %v1706, 0.0
    %v1836 = vand.u32 %v1706, 2147483648
    %v1837 = vsel %vm1835, %v1836, %v1834
    %v1838 = vrsqrt.pop %v1707
    %v1839 = vmul.f32 %v1838, %v1707
    %v1840 = vmul.f32 %v1839, %v1838
    %v1841 = vmul.f32 0.5, %v1840
    %v1842 = vsub.f32 1.5, %v1841
    %v1843 = vmul.f32 %v1838, %v1842
    %v1844 = vmul.f32 %v1707, %v1843
    %vm1845 = vcmp.eq.f32.partialorder %v1707, inf
    %v1846 = vsel %vm1845, %v1707, %v1844
    %vm1847 = vcmp.eq.f32.partialorder %v1707, 0.0
    %v1848 = vand.u32 %v1707, 2147483648
    %v1849 = vsel %vm1847, %v1848, %v1846
    %v1850 = vrsqrt.pop %v1708
    %v1851 = vmul.f32 %v1850, %v1708
    %v1852 = vmul.f32 %v1851, %v1850
    %v1853 = vmul.f32 0.5, %v1852
    %v1854 = vsub.f32 1.5, %v1853
    %v1855 = vmul.f32 %v1850, %v1854
    %v1856 = vmul.f32 %v1708, %v1855
    %vm1857 = vcmp.eq.f32.partialorder %v1708, inf
    %v1858 = vsel %vm1857, %v1708, %v1856
    %vm1859 = vcmp.eq.f32.partialorder %v1708, 0.0
    %v1860 = vand.u32 %v1708, 2147483648
    %v1861 = vsel %vm1859, %v1860, %v1858
    %v1862 = vrsqrt.pop %v1709
    %v1863 = vmul.f32 %v1862, %v1709
    %v1864 = vmul.f32 %v1863, %v1862
    %v1865 = vmul.f32 0.5, %v1864
    %v1866 = vsub.f32 1.5, %v1865
    %v1867 = vmul.f32 %v1862, %v1866
    %v1868 = vmul.f32 %v1709, %v1867
    %vm1869 = vcmp.eq.f32.partialorder %v1709, inf
    %v1870 = vsel %vm1869, %v1709, %v1868
    %vm1871 = vcmp.eq.f32.partialorder %v1709, 0.0
    %v1872 = vand.u32 %v1709, 2147483648
    %v1873 = vsel %vm1871, %v1872, %v1870
    %v1874 = vrsqrt.pop %v1710
    %v1875 = vmul.f32 %v1874, %v1710
    %v1876 = vmul.f32 %v1875, %v1874
    %v1877 = vmul.f32 0.5, %v1876
    %v1878 = vsub.f32 1.5, %v1877
    %v1879 = vmul.f32 %v1874, %v1878
    %v1880 = vmul.f32 %v1710, %v1879
    %vm1881 = vcmp.eq.f32.partialorder %v1710, inf
    %v1882 = vsel %vm1881, %v1710, %v1880
    %vm1883 = vcmp.eq.f32.partialorder %v1710, 0.0
    %v1884 = vand.u32 %v1710, 2147483648
    %v1885 = vsel %vm1883, %v1884, %v1882
    %v1886 = vrsqrt.pop %v1711
    %v1887 = vmul.f32 %v1886, %v1711
    %v1888 = vmul.f32 %v1887, %v1886
    %v1889 = vmul.f32 0.5, %v1888
    %v1890 = vsub.f32 1.5, %v1889
    %v1891 = vmul.f32 %v1886, %v1890
    %v1892 = vmul.f32 %v1711, %v1891
    %vm1893 = vcmp.eq.f32.partialorder %v1711, inf
    %v1894 = vsel %vm1893, %v1711, %v1892
    %vm1895 = vcmp.eq.f32.partialorder %v1711, 0.0
    %v1896 = vand.u32 %v1711, 2147483648
    %v1897 = vsel %vm1895, %v1896, %v1894
    %v1898 = vrsqrt.pop %v1712
    %v1899 = vmul.f32 %v1898, %v1712
    %v1900 = vmul.f32 %v1899, %v1898
    %v1901 = vmul.f32 0.5, %v1900
    %v1902 = vsub.f32 1.5, %v1901
    %v1903 = vmul.f32 %v1898, %v1902
    %v1904 = vmul.f32 %v1712, %v1903
    %vm1905 = vcmp.eq.f32.partialorder %v1712, inf
    %v1906 = vsel %vm1905, %v1712, %v1904
    %vm1907 = vcmp.eq.f32.partialorder %v1712, 0.0
    %v1908 = vand.u32 %v1712, 2147483648
    %v1909 = vsel %vm1907, %v1908, %v1906
    %v1910 = vrsqrt.pop %v1713
    %v1911 = vmul.f32 %v1910, %v1713
    %v1912 = vmul.f32 %v1911, %v1910
    %v1913 = vmul.f32 0.5, %v1912
    %v1914 = vsub.f32 1.5, %v1913
    %v1915 = vmul.f32 %v1910, %v1914
    %v1916 = vmul.f32 %v1713, %v1915
    %vm1917 = vcmp.eq.f32.partialorder %v1713, inf
    %v1918 = vsel %vm1917, %v1713, %v1916
    %vm1919 = vcmp.eq.f32.partialorder %v1713, 0.0
    %v1920 = vand.u32 %v1713, 2147483648
    %v1921 = vsel %vm1919, %v1920, %v1918
    %v1922 = vrsqrt.pop %v1714
    %v1923 = vmul.f32 %v1922, %v1714
    %v1924 = vmul.f32 %v1923, %v1922
    %v1925 = vmul.f32 0.5, %v1924
    %v1926 = vsub.f32 1.5, %v1925
    %v1927 = vmul.f32 %v1922, %v1926
    %v1928 = vmul.f32 %v1714, %v1927
    %vm1929 = vcmp.eq.f32.partialorder %v1714, inf
    %v1930 = vsel %vm1929, %v1714, %v1928
    %vm1931 = vcmp.eq.f32.partialorder %v1714, 0.0
    %v1932 = vand.u32 %v1714, 2147483648
    %v1933 = vsel %vm1931, %v1932, %v1930
    %v1934 = vrsqrt.pop %v1715
    %v1935 = vmul.f32 %v1934, %v1715
    %v1936 = vmul.f32 %v1935, %v1934
    %v1937 = vmul.f32 0.5, %v1936
    %v1938 = vsub.f32 1.5, %v1937
    %v1939 = vmul.f32 %v1934, %v1938
    %v1940 = vmul.f32 %v1715, %v1939
    %vm1941 = vcmp.eq.f32.partialorder %v1715, inf
    %v1942 = vsel %vm1941, %v1715, %v1940
    %vm1943 = vcmp.eq.f32.partialorder %v1715, 0.0
    %v1944 = vand.u32 %v1715, 2147483648
    %v1945 = vsel %vm1943, %v1944, %v1942
    %v1946 = vrsqrt.pop %v1716
    %v1947 = vmul.f32 %v1946, %v1716
    %v1948 = vmul.f32 %v1947, %v1946
    %v1949 = vmul.f32 0.5, %v1948
    %v1950 = vsub.f32 1.5, %v1949
    %v1951 = vmul.f32 %v1946, %v1950
    %v1952 = vmul.f32 %v1716, %v1951
    %vm1953 = vcmp.eq.f32.partialorder %v1716, inf
    %v1954 = vsel %vm1953, %v1716, %v1952
    %vm1955 = vcmp.eq.f32.partialorder %v1716, 0.0
    %v1956 = vand.u32 %v1716, 2147483648
    %v1957 = vsel %vm1955, %v1956, %v1954
    %v1958 = vrsqrt.pop %v1717
    %v1959 = vmul.f32 %v1958, %v1717
    %v1960 = vmul.f32 %v1959, %v1958
    %v1961 = vmul.f32 0.5, %v1960
    %v1962 = vsub.f32 1.5, %v1961
    %v1963 = vmul.f32 %v1958, %v1962
    %v1964 = vmul.f32 %v1717, %v1963
    %vm1965 = vcmp.eq.f32.partialorder %v1717, inf
    %v1966 = vsel %vm1965, %v1717, %v1964
    %vm1967 = vcmp.eq.f32.partialorder %v1717, 0.0
    %v1968 = vand.u32 %v1717, 2147483648
    %v1969 = vsel %vm1967, %v1968, %v1966
    %v1970 = vrsqrt.pop %v1718
    %v1971 = vmul.f32 %v1970, %v1718
    %v1972 = vmul.f32 %v1971, %v1970
    %v1973 = vmul.f32 0.5, %v1972
    %v1974 = vsub.f32 1.5, %v1973
    %v1975 = vmul.f32 %v1970, %v1974
    %v1976 = vmul.f32 %v1718, %v1975
    %vm1977 = vcmp.eq.f32.partialorder %v1718, inf
    %v1978 = vsel %vm1977, %v1718, %v1976
    %vm1979 = vcmp.eq.f32.partialorder %v1718, 0.0
    %v1980 = vand.u32 %v1718, 2147483648
    %v1981 = vsel %vm1979, %v1980, %v1978
    %v1982 = vrsqrt.pop %v1719
    %v1983 = vmul.f32 %v1982, %v1719
    %v1984 = vmul.f32 %v1983, %v1982
    %v1985 = vmul.f32 0.5, %v1984
    %v1986 = vsub.f32 1.5, %v1985
    %v1987 = vmul.f32 %v1982, %v1986
    %v1988 = vmul.f32 %v1719, %v1987
    %vm1989 = vcmp.eq.f32.partialorder %v1719, inf
    %v1990 = vsel %vm1989, %v1719, %v1988
    %vm1991 = vcmp.eq.f32.partialorder %v1719, 0.0
    %v1992 = vand.u32 %v1719, 2147483648
    %v1993 = vsel %vm1991, %v1992, %v1990
    %v1994 = vrsqrt.pop %v1720
    %v1995 = vmul.f32 %v1994, %v1720
    %v1996 = vmul.f32 %v1995, %v1994
    %v1997 = vmul.f32 0.5, %v1996
    %v1998 = vsub.f32 1.5, %v1997
    %v1999 = vmul.f32 %v1994, %v1998
    %v2000 = vmul.f32 %v1720, %v1999
    %vm2001 = vcmp.eq.f32.partialorder %v1720, inf
    %v2002 = vsel %vm2001, %v1720, %v2000
    %vm2003 = vcmp.eq.f32.partialorder %v1720, 0.0
    %v2004 = vand.u32 %v1720, 2147483648
    %v2005 = vsel %vm2003, %v2004, %v2002
    %v2006 = vrsqrt.pop %v1721
    %v2007 = vmul.f32 %v2006, %v1721
    %v2008 = vmul.f32 %v2007, %v2006
    %v2009 = vmul.f32 0.5, %v2008
    %v2010 = vsub.f32 1.5, %v2009
    %v2011 = vmul.f32 %v2006, %v2010
    %v2012 = vmul.f32 %v1721, %v2011
    %vm2013 = vcmp.eq.f32.partialorder %v1721, inf
    %v2014 = vsel %vm2013, %v1721, %v2012
    %vm2015 = vcmp.eq.f32.partialorder %v1721, 0.0
    %v2016 = vand.u32 %v1721, 2147483648
    %v2017 = vsel %vm2015, %v2016, %v2014
    %v2018 = vrsqrt.pop %v1722
    %v2019 = vmul.f32 %v2018, %v1722
    %v2020 = vmul.f32 %v2019, %v2018
    %v2021 = vmul.f32 0.5, %v2020
    %v2022 = vsub.f32 1.5, %v2021
    %v2023 = vmul.f32 %v2018, %v2022
    %v2024 = vmul.f32 %v1722, %v2023
    %vm2025 = vcmp.eq.f32.partialorder %v1722, inf
    %v2026 = vsel %vm2025, %v1722, %v2024
    %vm2027 = vcmp.eq.f32.partialorder %v1722, 0.0
    %v2028 = vand.u32 %v1722, 2147483648
    %v2029 = vsel %vm2027, %v2028, %v2026
    %v2030 = vrsqrt.pop %v1723
    %v2031 = vmul.f32 %v2030, %v1723
    %v2032 = vmul.f32 %v2031, %v2030
    %v2033 = vmul.f32 0.5, %v2032
    %v2034 = vsub.f32 1.5, %v2033
    %v2035 = vmul.f32 %v2030, %v2034
    %v2036 = vmul.f32 %v1723, %v2035
    %vm2037 = vcmp.eq.f32.partialorder %v1723, inf
    %v2038 = vsel %vm2037, %v1723, %v2036
    %vm2039 = vcmp.eq.f32.partialorder %v1723, 0.0
    %v2040 = vand.u32 %v1723, 2147483648
    %v2041 = vsel %vm2039, %v2040, %v2038
    %v2042 = vrsqrt.pop %v1724
    %v2043 = vmul.f32 %v2042, %v1724
    %v2044 = vmul.f32 %v2043, %v2042
    %v2045 = vmul.f32 0.5, %v2044
    %v2046 = vsub.f32 1.5, %v2045
    %v2047 = vmul.f32 %v2042, %v2046
    %v2048 = vmul.f32 %v1724, %v2047
    %vm2049 = vcmp.eq.f32.partialorder %v1724, inf
    %v2050 = vsel %vm2049, %v1724, %v2048
    %vm2051 = vcmp.eq.f32.partialorder %v1724, 0.0
    %v2052 = vand.u32 %v1724, 2147483648
    %v2053 = vsel %vm2051, %v2052, %v2050
    %v2054 = vrsqrt.pop %v1725
    %v2055 = vmul.f32 %v2054, %v1725
    %v2056 = vmul.f32 %v2055, %v2054
    %v2057 = vmul.f32 0.5, %v2056
    %v2058 = vsub.f32 1.5, %v2057
    %v2059 = vmul.f32 %v2054, %v2058
    %v2060 = vmul.f32 %v1725, %v2059
    %vm2061 = vcmp.eq.f32.partialorder %v1725, inf
    %v2062 = vsel %vm2061, %v1725, %v2060
    %vm2063 = vcmp.eq.f32.partialorder %v1725, 0.0
    %v2064 = vand.u32 %v1725, 2147483648
    %v2065 = vsel %vm2063, %v2064, %v2062
    %v2066 = vrsqrt.pop %v1726
    %v2067 = vmul.f32 %v2066, %v1726
    %v2068 = vmul.f32 %v2067, %v2066
    %v2069 = vmul.f32 0.5, %v2068
    %v2070 = vsub.f32 1.5, %v2069
    %v2071 = vmul.f32 %v2066, %v2070
    %v2072 = vmul.f32 %v1726, %v2071
    %vm2073 = vcmp.eq.f32.partialorder %v1726, inf
    %v2074 = vsel %vm2073, %v1726, %v2072
    %vm2075 = vcmp.eq.f32.partialorder %v1726, 0.0
    %v2076 = vand.u32 %v1726, 2147483648
    %v2077 = vsel %vm2075, %v2076, %v2074
    %v2078 = vrsqrt.pop %v1727
    %v2079 = vmul.f32 %v2078, %v1727
    %v2080 = vmul.f32 %v2079, %v2078
    %v2081 = vmul.f32 0.5, %v2080
    %v2082 = vsub.f32 1.5, %v2081
    %v2083 = vmul.f32 %v2078, %v2082
    %v2084 = vmul.f32 %v1727, %v2083
    %vm2085 = vcmp.eq.f32.partialorder %v1727, inf
    %v2086 = vsel %vm2085, %v1727, %v2084
    %vm2087 = vcmp.eq.f32.partialorder %v1727, 0.0
    %v2088 = vand.u32 %v1727, 2147483648
    %v2089 = vsel %vm2087, %v2088, %v2086
    %v2090 = vrsqrt.pop %v1728
    %v2091 = vmul.f32 %v2090, %v1728
    %v2092 = vmul.f32 %v2091, %v2090
    %v2093 = vmul.f32 0.5, %v2092
    %v2094 = vsub.f32 1.5, %v2093
    %v2095 = vmul.f32 %v2090, %v2094
    %v2096 = vmul.f32 %v1728, %v2095
    %vm2097 = vcmp.eq.f32.partialorder %v1728, inf
    %v2098 = vsel %vm2097, %v1728, %v2096
    %vm2099 = vcmp.eq.f32.partialorder %v1728, 0.0
    %v2100 = vand.u32 %v1728, 2147483648
    %v2101 = vsel %vm2099, %v2100, %v2098
    %v2102 = vrsqrt.pop %v1729
    %v2103 = vmul.f32 %v2102, %v1729
    %v2104 = vmul.f32 %v2103, %v2102
    %v2105 = vmul.f32 0.5, %v2104
    %v2106 = vsub.f32 1.5, %v2105
    %v2107 = vmul.f32 %v2102, %v2106
    %v2108 = vmul.f32 %v1729, %v2107
    %vm2109 = vcmp.eq.f32.partialorder %v1729, inf
    %v2110 = vsel %vm2109, %v1729, %v2108
    %vm2111 = vcmp.eq.f32.partialorder %v1729, 0.0
    %v2112 = vand.u32 %v1729, 2147483648
    %v2113 = vsel %vm2111, %v2112, %v2110
    %v2114 = vadd.f32 %v1741, %v1765
    %v2115 = vadd.f32 %v2114, %v1789
    %v2116 = vadd.f32 %v2115, %v1813
    %v2117 = vadd.f32 %v2116, %v1837
    %v2118 = vadd.f32 %v2117, %v1861
    %v2119 = vadd.f32 %v2118, %v1885
    %v2120 = vadd.f32 %v2119, %v1909
    %v2121 = vrot.slane %v2120, 4
    %v2122 = vadd.f32 %v2120, %v2121
    %v2123 = vrot.slane %v2122, 2
    %v2124 = vadd.f32 %v2122, %v2123
    %v2125 = vrot.slane %v2124, 1
    %v2126 = vadd.f32 %v2124, %v2125
    %v2127 = vadd.f32 %v1753, %v1777
    %v2128 = vadd.f32 %v2127, %v1801
    %v2129 = vadd.f32 %v2128, %v1825
    %v2130 = vadd.f32 %v2129, %v1849
    %v2131 = vadd.f32 %v2130, %v1873
    %v2132 = vadd.f32 %v2131, %v1897
    %v2133 = vadd.f32 %v2132, %v1921
    %v2134 = vrot.slane %v2133, 4
    %v2135 = vadd.f32 %v2133, %v2134
    %v2136 = vrot.slane %v2135, 2
    %v2137 = vadd.f32 %v2135, %v2136
    %v2138 = vrot.slane %v2137, 1
    %v2139 = vadd.f32 %v2137, %v2138
    %v2140 = vadd.f32 %v1933, %v1957
    %v2141 = vadd.f32 %v2140, %v1981
    %v2142 = vadd.f32 %v2141, %v2005
    %v2143 = vadd.f32 %v2142, %v2029
    %v2144 = vadd.f32 %v2143, %v2053
    %v2145 = vadd.f32 %v2144, %v2077
    %v2146 = vadd.f32 %v2145, %v2101
    %v2147 = vrot.slane %v2146, 4
    %v2148 = vadd.f32 %v2146, %v2147
    %v2149 = vrot.slane %v2148, 2
    %v2150 = vadd.f32 %v2148, %v2149
    %v2151 = vrot.slane %v2150, 1
    %v2152 = vadd.f32 %v2150, %v2151
    %v2153 = vadd.f32 %v1945, %v1969
    %v2154 = vadd.f32 %v2153, %v1993
    %v2155 = vadd.f32 %v2154, %v2017
    %v2156 = vadd.f32 %v2155, %v2041
    %v2157 = vadd.f32 %v2156, %v2065
    %v2158 = vadd.f32 %v2157, %v2089
    %v2159 = vadd.f32 %v2158, %v2113
    %v2160 = vrot.slane %v2159, 4
    %v2161 = vadd.f32 %v2159, %v2160
    %v2162 = vrot.slane %v2161, 2
    %v2163 = vadd.f32 %v2161, %v2162
    %v2164 = vrot.slane %v2163, 1
    %v2165 = vadd.f32 %v2163, %v2164
    %v2166 = vadd.f32 %v2126, 1e-12
    %v2167 = vadd.f32 %v2139, 1e-12
    %v2168 = vadd.f32 %v2152, 1e-12
    %v2169 = vadd.f32 %v2165, 1e-12
    %v2170 = vrcp.pop %v2166
    %v2171 = vrcp.pop %v2167
    %v2172 = vrcp.pop %v2168
    %v2173 = vrcp.pop %v2169
    %v2174 = vmul.f32 %v1741, %v2170
    %v2175 = vmul.f32 %v1753, %v2171
    %v2176 = vmul.f32 %v1765, %v2170
    %v2177 = vmul.f32 %v1777, %v2171
    %v2178 = vmul.f32 %v1789, %v2170
    %v2179 = vmul.f32 %v1801, %v2171
    %v2180 = vmul.f32 %v1813, %v2170
    %v2181 = vmul.f32 %v1825, %v2171
    %v2182 = vmul.f32 %v1837, %v2170
    %v2183 = vmul.f32 %v1849, %v2171
    %v2184 = vmul.f32 %v1861, %v2170
    %v2185 = vmul.f32 %v1873, %v2171
    %v2186 = vmul.f32 %v1885, %v2170
    %v2187 = vmul.f32 %v1897, %v2171
    %v2188 = vmul.f32 %v1909, %v2170
    %v2189 = vmul.f32 %v1921, %v2171
    %v2190 = vmul.f32 %v1933, %v2172
    %v2191 = vmul.f32 %v1945, %v2173
    %v2192 = vmul.f32 %v1957, %v2172
    %v2193 = vmul.f32 %v1969, %v2173
    %v2194 = vmul.f32 %v1981, %v2172
    %v2195 = vmul.f32 %v1993, %v2173
    %v2196 = vmul.f32 %v2005, %v2172
    %v2197 = vmul.f32 %v2017, %v2173
    %v2198 = vmul.f32 %v2029, %v2172
    %v2199 = vmul.f32 %v2041, %v2173
    %v2200 = vmul.f32 %v2053, %v2172
    %v2201 = vmul.f32 %v2065, %v2173
    %v2202 = vmul.f32 %v2077, %v2172
    %v2203 = vmul.f32 %v2089, %v2173
    %v2204 = vmul.f32 %v2101, %v2172
    %v2205 = vmul.f32 %v2113, %v2173
    %2206 = vst [vmem:[#allocation13] sm:$0xff] %v2174
    %2207 = vst [vmem:[#allocation13 + $0x8] sm:$0xff] %v2175
    %2208 = vst [vmem:[#allocation13 + $0x10] sm:$0xff] %v2176
    %2209 = vst [vmem:[#allocation13 + $0x18] sm:$0xff] %v2177
    %2210 = vst [vmem:[#allocation13 + $0x20] sm:$0xff] %v2178
    %2211 = vst [vmem:[#allocation13 + $0x28] sm:$0xff] %v2179
    %2212 = vst [vmem:[#allocation13 + $0x30] sm:$0xff] %v2180
    %2213 = vst [vmem:[#allocation13 + $0x38] sm:$0xff] %v2181
    %2214 = vst [vmem:[#allocation13 + $0x40] sm:$0xff] %v2182
    %2215 = vst [vmem:[#allocation13 + $0x48] sm:$0xff] %v2183
    %2216 = vst [vmem:[#allocation13 + $0x50] sm:$0xff] %v2184
    %2217 = vst [vmem:[#allocation13 + $0x58] sm:$0xff] %v2185
    %2218 = vst [vmem:[#allocation13 + $0x60] sm:$0xff] %v2186
    %2219 = vst [vmem:[#allocation13 + $0x68] sm:$0xff] %v2187
    %2220 = vst [vmem:[#allocation13 + $0x70] sm:$0xff] %v2188
    %2221 = vst [vmem:[#allocation13 + $0x78] sm:$0xff] %v2189
    %2222 = vst [vmem:[#allocation13 + $0x80] sm:$0xff] %v2190
    %2223 = vst [vmem:[#allocation13 + $0x88] sm:$0xff] %v2191
    %2224 = vst [vmem:[#allocation13 + $0x90] sm:$0xff] %v2192
    %2225 = vst [vmem:[#allocation13 + $0x98] sm:$0xff] %v2193
    %2226 = vst [vmem:[#allocation13 + $0xa0] sm:$0xff] %v2194
    %2227 = vst [vmem:[#allocation13 + $0xa8] sm:$0xff] %v2195
    %2228 = vst [vmem:[#allocation13 + $0xb0] sm:$0xff] %v2196
    %2229 = vst [vmem:[#allocation13 + $0xb8] sm:$0xff] %v2197
    %2230 = vst [vmem:[#allocation13 + $0xc0] sm:$0xff] %v2198
    %2231 = vst [vmem:[#allocation13 + $0xc8] sm:$0xff] %v2199
    %2232 = vst [vmem:[#allocation13 + $0xd0] sm:$0xff] %v2200
    %2233 = vst [vmem:[#allocation13 + $0xd8] sm:$0xff] %v2201
    %2234 = vst [vmem:[#allocation13 + $0xe0] sm:$0xff] %v2202
    %2235 = vst [vmem:[#allocation13 + $0xe8] sm:$0xff] %v2203
    %2236 = vst [vmem:[#allocation13 + $0xf0] sm:$0xff] %v2204
    %2237 = vst [vmem:[#allocation13 + $0xf8] sm:$0xff] %v2205
    // Predicated region
    $region50: #{tpu_custom_call.1} parent=1 // pred_check
      _
    $region51: #{tpu_custom_call.1} parent=1 // pred_check_branch
      %2239 = sbr.rel (0) target = $region53
    $region52: #{tpu_custom_call.1} parent=1 // pred_region
      %2241 = vsyncadd [#allocation4], 0
      %s2242 = sshll.u32 [#allocation13], 4
      %s2243 = int_to_ptr.vmem [resolvable:$true] %s2242
      %s2244 = sshll.u32 %s6, 4
      %s2245 = int_to_ptr.hbm [resolvable:$true] %s2244
      %2250 = dma.vmem_to_hbm [thread:$0]  %s2243, 4096, %s2245, [#allocation4], 256, 256, 16
    $region53: #{tpu_custom_call.1} parent=1 // pred_fallthru
      _
    // Predicated region
    $region54: #{tpu_custom_call.1} parent=1 // pred_check
      _
    $region55: #{tpu_custom_call.1} parent=1 // pred_check_branch
      %2252 = sbr.rel (0) target = $region57
    $region56: #{tpu_custom_call.1} parent=1 // pred_region
      %2254 = dma.done [#allocation4], 4096
    $region57: #{tpu_custom_call.1} parent=1 // pred_fallthru
      _
    %2255 = vsyncpa [#allocation3], 1
    %2256 = vsyncpa [#allocation6], 1
    %2257 = vsyncpa [#allocation9], 1
    %2258 = vsyncpa [#allocation12], 1
    %2259 = vsyncpa [#allocation4], 1

</llo_original>
